<compile_context>
chip_gen: v7x
topology: tpu7x:2x2x1
jax: 0.10.0
libtpu: 0.0.40
codegen_flags: <defaults>
</compile_context>

<pallas_src>
import jax
import jax.numpy as jnp
import numpy as np
from jax.experimental import pallas as pl
from jax.experimental.pallas import tpu as pltpu

# ---------------------------------------------------------------------------
# Static geometry.  Common flat row stride = 20 lanes for every feature map.
# ---------------------------------------------------------------------------
WP = 20                      # flat row stride (lanes)
F17 = 17 * WP                # 340: 17-row slabs (branch-A maps, conv1 out, output)
XA_LEN = 21 * WP             # 420: x padded by 2 -> (20,20), + 1 spare zero row
XB_LEN = 19 * WP             # 380: x padded by 1 -> (18,18) right-padded to 20
V1_OFF = 128                 # lane-aligned placement of v1 inside its padded slab
TAP_BASE = V1_OFF - (2 * WP + 1)   # 87: conv2 tap (i=0,j=0) read offset
V1P_W = 512                  # padded-v1 slab width (max read = 149 + 340 = 489)

# Packed weight/mask slab layout, one (11, 340) f32 input (built once at init):
#   [0:10,  0:16]  wA   convT-as-conv weights   [out, i*4+j]
#   [0:10, 16:17]  bA
#   [0:10, 17:18]  wC   1x1-conv weights (one per in-channel)
#   [0: 7, 18:24]  w1   conv1 weights (in-channels pre-summed)  [out, i*3+j]
#   [0: 7, 24:25]  b1
#   [0: 8, 25:26]  b2
#   [0: 1, 26:27]  bC
#   [0: 8, 32:128] w2p  conv2-as-conv weights   [out, tap*8 + cin] (cin padded to 8)
#   [10 ,  0:340]  mask (lane % 20 < 16)
W_ROWS = 11


# ---------------------------------------------------------------------------
# The single fused kernel
# ---------------------------------------------------------------------------
def _fused_forward_kernel(x_ref, w_ref, out_ref, v1p_ref, col_ref):
    f32 = jnp.float32

    # ---- branch A: v2a = relu(convT_eq(x)) -- 16 rank-1 FMAs on the VPU,
    #      split into 4 independent partial accumulators (shorter dep chain).
    partsA = []
    for g in range(4):
        acc = None
        for k in range(4 * g, 4 * (g + 1)):
            i, j = divmod(k, 4)
            off = i * WP + j
            t = w_ref[0:10, k:k + 1] * x_ref[0:1, off:off + F17]
            acc = t if acc is None else acc + t
        partsA.append(acc)
    v2a = jnp.maximum((partsA[0] + partsA[1]) + (partsA[2] + partsA[3])
                      + w_ref[0:10, 16:17], 0.0)                        # (10, 340)

    # ---- v3 = sigmoid(1x1 conv(v2a)): VPU weighted sum + sublane reduce
    #      (no M=1 MXU round trip).
    v3 = jax.nn.sigmoid(
        jnp.sum(v2a * w_ref[0:10, 17:18], axis=0, keepdims=True)
        + w_ref[0:1, 26:27])                                            # (1, 340)

    # ---- branch B: v1 = relu(conv1(x)) -- 6 rank-1 FMAs, 2 partial accums.
    parts1 = []
    for g in range(2):
        acc = None
        for k in range(3 * g, 3 * (g + 1)):
            i, j = divmod(k, 3)
            off = i * WP + j
            t = w_ref[0:7, 18 + k:19 + k] * x_ref[1:2, off:off + F17]
            acc = t if acc is None else acc + t
        parts1.append(acc)
    v1 = jnp.maximum(parts1[0] + parts1[1] + w_ref[0:7, 24:25], 0.0)
    # zero the junk columns (lane % 20 >= 16) so they act as conv2's zero pad
    v1 = v1 * w_ref[10:11, 0:F17]                                       # (7, 340)

    # ---- place v1 lane-aligned (offset 128) into its zero-padded flat slab.
    #      Only the halo is zeroed; row 7 is a permanent zero row so the
    #      im2col copies below can move aligned full 8-row blocks.
    v1p_ref[:, 0:V1_OFF] = jnp.zeros((8, V1_OFF), f32)
    v1p_ref[:, V1P_W - 128:V1P_W] = jnp.zeros((8, 128), f32)
    v1p_ref[7:8, V1_OFF:V1P_W - 128] = jnp.zeros((1, V1P_W - 128 - V1_OFF), f32)
    v1p_ref[0:7, V1_OFF:V1_OFF + F17] = v1

    # ---- conv2_eq + sigmoid: flat im2col (12 aligned 8-row copies) and ONE
    #      MXU contraction (8,96)@(96,340) instead of 12 K=7 matmuls.
    for k in range(12):
        i, j = divmod(k, 3)
        off = TAP_BASE + i * WP + j
        col_ref[8 * k:8 * (k + 1), :] = v1p_ref[:, off:off + F17]
    acc2 = jnp.dot(w_ref[0:8, 32:128], col_ref[...],
                   preferred_element_type=f32)                          # (8, 340)
    v2 = jax.nn.sigmoid(acc2 + w_ref[0:8, 25:26])

    # ---- result = v2 * v3 (same stride-20 layout -> plain elementwise)
    # TODO(synk): v2 (8,18,16) and v3 (1,17,17) are not broadcast-compatible in
    # the original module; multiply is done on the overlapping 17x16 crop.
    out_ref[...] = v2 * v3                                              # (8, 340)


# ---------------------------------------------------------------------------
# One-time weight packing (hoisted out of the per-call jit)
# ---------------------------------------------------------------------------
def pack_params(params):
    # ConvTranspose2d(stride=1, pad=p) == Conv2d(flipped kernel, swapped
    # channels, pad=k-1-p).
    wT_eq = jnp.flip(params["convT_w"], (2, 3)).transpose(1, 0, 2, 3)   # (10,1,4,4)
    wA = wT_eq.reshape(10, 16)                                          # [o, i*4+j]
    bA = params["convT_b"]                                              # (10,)
    wC = params["conv_w"].reshape(10)                                   # (10,)
    bC = params["conv_b"].reshape(())                                   # scalar
    # TODO(synk): conv1 expects 4 input channels but x1 has 1 (module cannot
    # run as written); tiling the single channel to 4 is mathematically
    # identical to summing conv1's weights over the in-channel axis.
    w1 = params["conv1_w"].sum(axis=1).reshape(7, 6)                    # [o, i*3+j]
    b1 = params["conv1_b"]                                              # (7,)
    w2_eq = jnp.flip(params["conv2_w"], (2, 3)).transpose(1, 0, 2, 3)   # (8,7,4,3)
    w2_tap = w2_eq.transpose(0, 2, 3, 1).reshape(8, 12, 7)              # [o, tap, c]
    w2p = jnp.pad(w2_tap, ((0, 0), (0, 0), (0, 1))).reshape(8, 96)      # cin pad to 8
    b2 = params["conv2_b"]                                              # (8,)
    mask = ((jnp.arange(F17) % WP) < 16).astype(jnp.float32)            # (340,)

    slab = jnp.zeros((W_ROWS, F17), jnp.float32)
    slab = slab.at[0:10, 0:16].set(wA)
    slab = slab.at[0:10, 16].set(bA)
    slab = slab.at[0:10, 17].set(wC)
    slab = slab.at[0:7, 18:24].set(w1)
    slab = slab.at[0:7, 24].set(b1)
    slab = slab.at[0:8, 25].set(b2)
    slab = slab.at[0, 26].set(bC)
    slab = slab.at[0:8, 32:128].set(w2p)
    slab = slab.at[10, 0:F17].set(mask)
    return slab


# ---------------------------------------------------------------------------
# Wrapper: x-slab prep + single 2-input pallas_call + output un-flatten
# ---------------------------------------------------------------------------
_VMEM_SPEC = pl.BlockSpec(memory_space=pltpu.MemorySpace.VMEM)


@jax.jit
def forward(x1, w_slab):
    x = x1[0, 0]                                                        # (16, 16)
    xA = jnp.pad(x, ((2, 3), (2, 2))).reshape(1, XA_LEN)                # convT-eq pad 2
    xB = jnp.pad(x, ((1, 2), (1, 3))).reshape(1, XB_LEN)                # conv1   pad 1
    x_slab = jnp.concatenate(
        [xA, jnp.pad(xB, ((0, 0), (0, XA_LEN - XB_LEN)))], axis=0)      # (2, 420)

    out_flat = pl.pallas_call(
        _fused_forward_kernel,
        out_shape=jax.ShapeDtypeStruct((8, F17), jnp.float32),
        in_specs=[_VMEM_SPEC, _VMEM_SPEC],
        out_specs=_VMEM_SPEC,
        scratch_shapes=[pltpu.VMEM((8, V1P_W), jnp.float32),            # padded v1
                        pltpu.VMEM((96, F17), jnp.float32)],            # im2col
    )(x_slab, w_slab)

    # un-flatten: (8, 17*20) -> (1, 8, 17, 16)
    return out_flat.reshape(8, 17, WP)[:, :, :16][None]


# ---------------------------------------------------------------------------
# Pure-JAX reference (same TODO(synk) choices) for numerical validation
# ---------------------------------------------------------------------------
def _conv2d_ref(x, w, b, ph, pw):
    Cin, H, W = x.shape
    Cout, _, kh, kw = w.shape
    xp = jnp.pad(x, ((0, 0), (ph, ph), (pw, pw)))
    OH, OW = H + 2 * ph - kh + 1, W + 2 * pw - kw + 1
    cols = [xp[:, i:i + OH, j:j + OW] for i in range(kh) for j in range(kw)]
    pat = jnp.stack(cols, 1).reshape(Cin * kh * kw, OH * OW)
    out = jnp.dot(w.reshape(Cout, -1), pat,
                  precision=jax.lax.Precision.HIGHEST) + b[:, None]
    return out.reshape(Cout, OH, OW)


def forward_ref(x1, params):
    x = x1[0]                                                           # (1,16,16)
    wT_eq = jnp.flip(params["convT_w"], (2, 3)).transpose(1, 0, 2, 3)
    v2a = jnp.maximum(_conv2d_ref(x, wT_eq, params["convT_b"], 2, 2), 0.0)
    v3 = jax.nn.sigmoid(_conv2d_ref(v2a, params["conv_w"], params["conv_b"], 0, 0))
    xb = jnp.tile(x, (4, 1, 1))                                         # channel workaround
    v1 = jnp.maximum(_conv2d_ref(xb, params["conv1_w"], params["conv1_b"], 1, 1), 0.0)
    w2_eq = jnp.flip(params["conv2_w"], (2, 3)).transpose(1, 0, 2, 3)
    v2 = jax.nn.sigmoid(_conv2d_ref(v1, w2_eq, params["conv2_b"], 2, 1))
    return (v2[:, :17, :16] * v3[:, :17, :16])[None]


# ---------------------------------------------------------------------------
def _uniform(key, shape, fan_in):
    bound = 1.0 / np.sqrt(fan_in)
    return jax.random.uniform(key, shape, jnp.float32, -bound, bound)


def init_params(key):
    ks = jax.random.split(key, 8)
    return {
        "convT_w": _uniform(ks[0], (1, 10, 4, 4), 10 * 4 * 4),
        "convT_b": _uniform(ks[1], (10,), 10 * 4 * 4),
        "conv_w": _uniform(ks[2], (1, 10, 1, 1), 10),
        "conv_b": _uniform(ks[3], (1,), 10),
        "conv1_w": _uniform(ks[4], (7, 4, 2, 3), 4 * 2 * 3),
        "conv1_b": _uniform(ks[5], (7,), 4 * 2 * 3),
        "conv2_w": _uniform(ks[6], (7, 8, 4, 3), 8 * 4 * 3),
        "conv2_b": _uniform(ks[7], (8,), 8 * 4 * 3),
    }


if __name__ == "__main__":
    key = jax.random.PRNGKey(0)
    k_in, k_par = jax.random.split(key)
    x1 = jax.random.normal(k_in, (1, 1, 16, 16), jnp.float32)
    params = init_params(k_par)

    w_slab = jax.block_until_ready(pack_params(params))   # once, at init

    out = jax.block_until_ready(forward(x1, w_slab))
    assert out.shape == (1, 8, 17, 16), out.shape

    ref = jax.block_until_ready(forward_ref(x1, params))
    np.testing.assert_allclose(np.asarray(out), np.asarray(ref),
                               rtol=1e-3, atol=1e-3)
    print("KERNEL_OK")
</pallas_src>

<mosaic_0001>
module attributes {stable_mosaic.version = 11 : i64} {
  func.func @_fused_forward_kernel(%arg0: memref<2x420xf32, #tpu.memory_space<vmem>>, %arg1: memref<11x340xf32, #tpu.memory_space<vmem>>, %arg2: memref<8x340xf32, #tpu.memory_space<vmem>>, %arg3: memref<8x512xf32, #tpu.memory_space<vmem>>, %arg4: memref<96x340xf32, #tpu.memory_space<vmem>>) attributes {dimension_semantics = [], scalar_prefetch = 0 : i64, scratch_operands = 2 : i64, tpu.core_type = #tpu.core_type<tc>} {
    %c0 = arith.constant 0 : index
    %c0_0 = arith.constant 0 : index
    %0 = vector.load %arg1[%c0, %c0_0] : memref<11x340xf32, #tpu.memory_space<vmem>>, vector<10x1xf32>
    %c0_1 = arith.constant 0 : index
    %c0_2 = arith.constant 0 : index
    %1 = vector.load %arg0[%c0_1, %c0_2] : memref<2x420xf32, #tpu.memory_space<vmem>>, vector<1x340xf32>
    %2 = vector.broadcast %0 : vector<10x1xf32> to vector<10x340xf32>
    %3 = vector.broadcast %1 : vector<1x340xf32> to vector<10x340xf32>
    %4 = arith.mulf %2, %3 : vector<10x340xf32>
    %c0_3 = arith.constant 0 : index
    %c1 = arith.constant 1 : index
    %5 = vector.load %arg1[%c0_3, %c1] : memref<11x340xf32, #tpu.memory_space<vmem>>, vector<10x1xf32>
    %c0_4 = arith.constant 0 : index
    %c1_5 = arith.constant 1 : index
    %6 = vector.load %arg0[%c0_4, %c1_5] : memref<2x420xf32, #tpu.memory_space<vmem>>, vector<1x340xf32>
    %7 = vector.broadcast %5 : vector<10x1xf32> to vector<10x340xf32>
    %8 = vector.broadcast %6 : vector<1x340xf32> to vector<10x340xf32>
    %9 = arith.mulf %7, %8 : vector<10x340xf32>
    %10 = arith.addf %4, %9 : vector<10x340xf32>
    %c0_6 = arith.constant 0 : index
    %c2 = arith.constant 2 : index
    %11 = vector.load %arg1[%c0_6, %c2] : memref<11x340xf32, #tpu.memory_space<vmem>>, vector<10x1xf32>
    %c0_7 = arith.constant 0 : index
    %c2_8 = arith.constant 2 : index
    %12 = vector.load %arg0[%c0_7, %c2_8] : memref<2x420xf32, #tpu.memory_space<vmem>>, vector<1x340xf32>
    %13 = vector.broadcast %11 : vector<10x1xf32> to vector<10x340xf32>
    %14 = vector.broadcast %12 : vector<1x340xf32> to vector<10x340xf32>
    %15 = arith.mulf %13, %14 : vector<10x340xf32>
    %16 = arith.addf %10, %15 : vector<10x340xf32>
    %c0_9 = arith.constant 0 : index
    %c3 = arith.constant 3 : index
    %17 = vector.load %arg1[%c0_9, %c3] : memref<11x340xf32, #tpu.memory_space<vmem>>, vector<10x1xf32>
    %c0_10 = arith.constant 0 : index
    %c3_11 = arith.constant 3 : index
    %18 = vector.load %arg0[%c0_10, %c3_11] : memref<2x420xf32, #tpu.memory_space<vmem>>, vector<1x340xf32>
    %19 = vector.broadcast %17 : vector<10x1xf32> to vector<10x340xf32>
    %20 = vector.broadcast %18 : vector<1x340xf32> to vector<10x340xf32>
    %21 = arith.mulf %19, %20 : vector<10x340xf32>
    %22 = arith.addf %16, %21 : vector<10x340xf32>
    %c0_12 = arith.constant 0 : index
    %c4 = arith.constant 4 : index
    %23 = vector.load %arg1[%c0_12, %c4] : memref<11x340xf32, #tpu.memory_space<vmem>>, vector<10x1xf32>
    %c0_13 = arith.constant 0 : index
    %c20 = arith.constant 20 : index
    %24 = vector.load %arg0[%c0_13, %c20] : memref<2x420xf32, #tpu.memory_space<vmem>>, vector<1x340xf32>
    %25 = vector.broadcast %23 : vector<10x1xf32> to vector<10x340xf32>
    %26 = vector.broadcast %24 : vector<1x340xf32> to vector<10x340xf32>
    %27 = arith.mulf %25, %26 : vector<10x340xf32>
    %c0_14 = arith.constant 0 : index
    %c5 = arith.constant 5 : index
    %28 = vector.load %arg1[%c0_14, %c5] : memref<11x340xf32, #tpu.memory_space<vmem>>, vector<10x1xf32>
    %c0_15 = arith.constant 0 : index
    %c21 = arith.constant 21 : index
    %29 = vector.load %arg0[%c0_15, %c21] : memref<2x420xf32, #tpu.memory_space<vmem>>, vector<1x340xf32>
    %30 = vector.broadcast %28 : vector<10x1xf32> to vector<10x340xf32>
    %31 = vector.broadcast %29 : vector<1x340xf32> to vector<10x340xf32>
    %32 = arith.mulf %30, %31 : vector<10x340xf32>
    %33 = arith.addf %27, %32 : vector<10x340xf32>
    %c0_16 = arith.constant 0 : index
    %c6 = arith.constant 6 : index
    %34 = vector.load %arg1[%c0_16, %c6] : memref<11x340xf32, #tpu.memory_space<vmem>>, vector<10x1xf32>
    %c0_17 = arith.constant 0 : index
    %c22 = arith.constant 22 : index
    %35 = vector.load %arg0[%c0_17, %c22] : memref<2x420xf32, #tpu.memory_space<vmem>>, vector<1x340xf32>
    %36 = vector.broadcast %34 : vector<10x1xf32> to vector<10x340xf32>
    %37 = vector.broadcast %35 : vector<1x340xf32> to vector<10x340xf32>
    %38 = arith.mulf %36, %37 : vector<10x340xf32>
    %39 = arith.addf %33, %38 : vector<10x340xf32>
    %c0_18 = arith.constant 0 : index
    %c7 = arith.constant 7 : index
    %40 = vector.load %arg1[%c0_18, %c7] : memref<11x340xf32, #tpu.memory_space<vmem>>, vector<10x1xf32>
    %c0_19 = arith.constant 0 : index
    %c23 = arith.constant 23 : index
    %41 = vector.load %arg0[%c0_19, %c23] : memref<2x420xf32, #tpu.memory_space<vmem>>, vector<1x340xf32>
    %42 = vector.broadcast %40 : vector<10x1xf32> to vector<10x340xf32>
    %43 = vector.broadcast %41 : vector<1x340xf32> to vector<10x340xf32>
    %44 = arith.mulf %42, %43 : vector<10x340xf32>
    %45 = arith.addf %39, %44 : vector<10x340xf32>
    %c0_20 = arith.constant 0 : index
    %c8 = arith.constant 8 : index
    %46 = vector.load %arg1[%c0_20, %c8] : memref<11x340xf32, #tpu.memory_space<vmem>>, vector<10x1xf32>
    %c0_21 = arith.constant 0 : index
    %c40 = arith.constant 40 : index
    %47 = vector.load %arg0[%c0_21, %c40] : memref<2x420xf32, #tpu.memory_space<vmem>>, vector<1x340xf32>
    %48 = vector.broadcast %46 : vector<10x1xf32> to vector<10x340xf32>
    %49 = vector.broadcast %47 : vector<1x340xf32> to vector<10x340xf32>
    %50 = arith.mulf %48, %49 : vector<10x340xf32>
    %c0_22 = arith.constant 0 : index
    %c9 = arith.constant 9 : index
    %51 = vector.load %arg1[%c0_22, %c9] : memref<11x340xf32, #tpu.memory_space<vmem>>, vector<10x1xf32>
    %c0_23 = arith.constant 0 : index
    %c41 = arith.constant 41 : index
    %52 = vector.load %arg0[%c0_23, %c41] : memref<2x420xf32, #tpu.memory_space<vmem>>, vector<1x340xf32>
    %53 = vector.broadcast %51 : vector<10x1xf32> to vector<10x340xf32>
    %54 = vector.broadcast %52 : vector<1x340xf32> to vector<10x340xf32>
    %55 = arith.mulf %53, %54 : vector<10x340xf32>
    %56 = arith.addf %50, %55 : vector<10x340xf32>
    %c0_24 = arith.constant 0 : index
    %c10 = arith.constant 10 : index
    %57 = vector.load %arg1[%c0_24, %c10] : memref<11x340xf32, #tpu.memory_space<vmem>>, vector<10x1xf32>
    %c0_25 = arith.constant 0 : index
    %c42 = arith.constant 42 : index
    %58 = vector.load %arg0[%c0_25, %c42] : memref<2x420xf32, #tpu.memory_space<vmem>>, vector<1x340xf32>
    %59 = vector.broadcast %57 : vector<10x1xf32> to vector<10x340xf32>
    %60 = vector.broadcast %58 : vector<1x340xf32> to vector<10x340xf32>
    %61 = arith.mulf %59, %60 : vector<10x340xf32>
    %62 = arith.addf %56, %61 : vector<10x340xf32>
    %c0_26 = arith.constant 0 : index
    %c11 = arith.constant 11 : index
    %63 = vector.load %arg1[%c0_26, %c11] : memref<11x340xf32, #tpu.memory_space<vmem>>, vector<10x1xf32>
    %c0_27 = arith.constant 0 : index
    %c43 = arith.constant 43 : index
    %64 = vector.load %arg0[%c0_27, %c43] : memref<2x420xf32, #tpu.memory_space<vmem>>, vector<1x340xf32>
    %65 = vector.broadcast %63 : vector<10x1xf32> to vector<10x340xf32>
    %66 = vector.broadcast %64 : vector<1x340xf32> to vector<10x340xf32>
    %67 = arith.mulf %65, %66 : vector<10x340xf32>
    %68 = arith.addf %62, %67 : vector<10x340xf32>
    %c0_28 = arith.constant 0 : index
    %c12 = arith.constant 12 : index
    %69 = vector.load %arg1[%c0_28, %c12] : memref<11x340xf32, #tpu.memory_space<vmem>>, vector<10x1xf32>
    %c0_29 = arith.constant 0 : index
    %c60 = arith.constant 60 : index
    %70 = vector.load %arg0[%c0_29, %c60] : memref<2x420xf32, #tpu.memory_space<vmem>>, vector<1x340xf32>
    %71 = vector.broadcast %69 : vector<10x1xf32> to vector<10x340xf32>
    %72 = vector.broadcast %70 : vector<1x340xf32> to vector<10x340xf32>
    %73 = arith.mulf %71, %72 : vector<10x340xf32>
    %c0_30 = arith.constant 0 : index
    %c13 = arith.constant 13 : index
    %74 = vector.load %arg1[%c0_30, %c13] : memref<11x340xf32, #tpu.memory_space<vmem>>, vector<10x1xf32>
    %c0_31 = arith.constant 0 : index
    %c61 = arith.constant 61 : index
    %75 = vector.load %arg0[%c0_31, %c61] : memref<2x420xf32, #tpu.memory_space<vmem>>, vector<1x340xf32>
    %76 = vector.broadcast %74 : vector<10x1xf32> to vector<10x340xf32>
    %77 = vector.broadcast %75 : vector<1x340xf32> to vector<10x340xf32>
    %78 = arith.mulf %76, %77 : vector<10x340xf32>
    %79 = arith.addf %73, %78 : vector<10x340xf32>
    %c0_32 = arith.constant 0 : index
    %c14 = arith.constant 14 : index
    %80 = vector.load %arg1[%c0_32, %c14] : memref<11x340xf32, #tpu.memory_space<vmem>>, vector<10x1xf32>
    %c0_33 = arith.constant 0 : index
    %c62 = arith.constant 62 : index
    %81 = vector.load %arg0[%c0_33, %c62] : memref<2x420xf32, #tpu.memory_space<vmem>>, vector<1x340xf32>
    %82 = vector.broadcast %80 : vector<10x1xf32> to vector<10x340xf32>
    %83 = vector.broadcast %81 : vector<1x340xf32> to vector<10x340xf32>
    %84 = arith.mulf %82, %83 : vector<10x340xf32>
    %85 = arith.addf %79, %84 : vector<10x340xf32>
    %c0_34 = arith.constant 0 : index
    %c15 = arith.constant 15 : index
    %86 = vector.load %arg1[%c0_34, %c15] : memref<11x340xf32, #tpu.memory_space<vmem>>, vector<10x1xf32>
    %c0_35 = arith.constant 0 : index
    %c63 = arith.constant 63 : index
    %87 = vector.load %arg0[%c0_35, %c63] : memref<2x420xf32, #tpu.memory_space<vmem>>, vector<1x340xf32>
    %88 = vector.broadcast %86 : vector<10x1xf32> to vector<10x340xf32>
    %89 = vector.broadcast %87 : vector<1x340xf32> to vector<10x340xf32>
    %90 = arith.mulf %88, %89 : vector<10x340xf32>
    %91 = arith.addf %85, %90 : vector<10x340xf32>
    %92 = arith.addf %22, %45 : vector<10x340xf32>
    %93 = arith.addf %68, %91 : vector<10x340xf32>
    %94 = arith.addf %92, %93 : vector<10x340xf32>
    %c0_36 = arith.constant 0 : index
    %c16 = arith.constant 16 : index
    %95 = vector.load %arg1[%c0_36, %c16] : memref<11x340xf32, #tpu.memory_space<vmem>>, vector<10x1xf32>
    %96 = vector.broadcast %95 : vector<10x1xf32> to vector<10x340xf32>
    %97 = arith.addf %94, %96 : vector<10x340xf32>
    %cst = arith.constant 0.000000e+00 : f32
    %98 = vector.broadcast %cst : f32 to vector<10x340xf32>
    %99 = arith.maximumf %97, %98 : vector<10x340xf32>
    %c0_37 = arith.constant 0 : index
    %c17 = arith.constant 17 : index
    %100 = vector.load %arg1[%c0_37, %c17] : memref<11x340xf32, #tpu.memory_space<vmem>>, vector<10x1xf32>
    %101 = vector.broadcast %100 : vector<10x1xf32> to vector<10x340xf32>
    %102 = arith.mulf %99, %101 : vector<10x340xf32>
    %cst_38 = arith.constant dense<0.000000e+00> : vector<340xf32>
    %103 = vector.multi_reduction <add>, %102, %cst_38 [0] : vector<10x340xf32> to vector<340xf32>
    %104 = vector.shape_cast %103 : vector<340xf32> to vector<1x340xf32>
    %c0_39 = arith.constant 0 : index
    %c26 = arith.constant 26 : index
    %105 = vector.load %arg1[%c0_39, %c26] : memref<11x340xf32, #tpu.memory_space<vmem>>, vector<1x1xf32>
    %106 = vector.broadcast %105 : vector<1x1xf32> to vector<1x340xf32>
    %107 = arith.addf %104, %106 : vector<1x340xf32>
    %108 = arith.negf %107 : vector<1x340xf32>
    %109 = math.exp %108 : vector<1x340xf32>
    %cst_40 = arith.constant 1.000000e+00 : f32
    %110 = vector.broadcast %cst_40 : f32 to vector<1x340xf32>
    %111 = arith.addf %110, %109 : vector<1x340xf32>
    %112 = arith.divf %110, %111 : vector<1x340xf32>
    %c0_41 = arith.constant 0 : index
    %c18 = arith.constant 18 : index
    %113 = vector.load %arg1[%c0_41, %c18] : memref<11x340xf32, #tpu.memory_space<vmem>>, vector<7x1xf32>
    %c1_42 = arith.constant 1 : index
    %c0_43 = arith.constant 0 : index
    %114 = vector.load %arg0[%c1_42, %c0_43] : memref<2x420xf32, #tpu.memory_space<vmem>>, vector<1x340xf32>
    %115 = vector.broadcast %113 : vector<7x1xf32> to vector<7x340xf32>
    %116 = vector.broadcast %114 : vector<1x340xf32> to vector<7x340xf32>
    %117 = arith.mulf %115, %116 : vector<7x340xf32>
    %c0_44 = arith.constant 0 : index
    %c19 = arith.constant 19 : index
    %118 = vector.load %arg1[%c0_44, %c19] : memref<11x340xf32, #tpu.memory_space<vmem>>, vector<7x1xf32>
    %c1_45 = arith.constant 1 : index
    %c1_46 = arith.constant 1 : index
    %119 = vector.load %arg0[%c1_45, %c1_46] : memref<2x420xf32, #tpu.memory_space<vmem>>, vector<1x340xf32>
    %120 = vector.broadcast %118 : vector<7x1xf32> to vector<7x340xf32>
    %121 = vector.broadcast %119 : vector<1x340xf32> to vector<7x340xf32>
    %122 = arith.mulf %120, %121 : vector<7x340xf32>
    %123 = arith.addf %117, %122 : vector<7x340xf32>
    %c0_47 = arith.constant 0 : index
    %c20_48 = arith.constant 20 : index
    %124 = vector.load %arg1[%c0_47, %c20_48] : memref<11x340xf32, #tpu.memory_space<vmem>>, vector<7x1xf32>
    %c1_49 = arith.constant 1 : index
    %c2_50 = arith.constant 2 : index
    %125 = vector.load %arg0[%c1_49, %c2_50] : memref<2x420xf32, #tpu.memory_space<vmem>>, vector<1x340xf32>
    %126 = vector.broadcast %124 : vector<7x1xf32> to vector<7x340xf32>
    %127 = vector.broadcast %125 : vector<1x340xf32> to vector<7x340xf32>
    %128 = arith.mulf %126, %127 : vector<7x340xf32>
    %129 = arith.addf %123, %128 : vector<7x340xf32>
    %c0_51 = arith.constant 0 : index
    %c21_52 = arith.constant 21 : index
    %130 = vector.load %arg1[%c0_51, %c21_52] : memref<11x340xf32, #tpu.memory_space<vmem>>, vector<7x1xf32>
    %c1_53 = arith.constant 1 : index
    %c20_54 = arith.constant 20 : index
    %131 = vector.load %arg0[%c1_53, %c20_54] : memref<2x420xf32, #tpu.memory_space<vmem>>, vector<1x340xf32>
    %132 = vector.broadcast %130 : vector<7x1xf32> to vector<7x340xf32>
    %133 = vector.broadcast %131 : vector<1x340xf32> to vector<7x340xf32>
    %134 = arith.mulf %132, %133 : vector<7x340xf32>
    %c0_55 = arith.constant 0 : index
    %c22_56 = arith.constant 22 : index
    %135 = vector.load %arg1[%c0_55, %c22_56] : memref<11x340xf32, #tpu.memory_space<vmem>>, vector<7x1xf32>
    %c1_57 = arith.constant 1 : index
    %c21_58 = arith.constant 21 : index
    %136 = vector.load %arg0[%c1_57, %c21_58] : memref<2x420xf32, #tpu.memory_space<vmem>>, vector<1x340xf32>
    %137 = vector.broadcast %135 : vector<7x1xf32> to vector<7x340xf32>
    %138 = vector.broadcast %136 : vector<1x340xf32> to vector<7x340xf32>
    %139 = arith.mulf %137, %138 : vector<7x340xf32>
    %140 = arith.addf %134, %139 : vector<7x340xf32>
    %c0_59 = arith.constant 0 : index
    %c23_60 = arith.constant 23 : index
    %141 = vector.load %arg1[%c0_59, %c23_60] : memref<11x340xf32, #tpu.memory_space<vmem>>, vector<7x1xf32>
    %c1_61 = arith.constant 1 : index
    %c22_62 = arith.constant 22 : index
    %142 = vector.load %arg0[%c1_61, %c22_62] : memref<2x420xf32, #tpu.memory_space<vmem>>, vector<1x340xf32>
    %143 = vector.broadcast %141 : vector<7x1xf32> to vector<7x340xf32>
    %144 = vector.broadcast %142 : vector<1x340xf32> to vector<7x340xf32>
    %145 = arith.mulf %143, %144 : vector<7x340xf32>
    %146 = arith.addf %140, %145 : vector<7x340xf32>
    %147 = arith.addf %129, %146 : vector<7x340xf32>
    %c0_63 = arith.constant 0 : index
    %c24 = arith.constant 24 : index
    %148 = vector.load %arg1[%c0_63, %c24] : memref<11x340xf32, #tpu.memory_space<vmem>>, vector<7x1xf32>
    %149 = vector.broadcast %148 : vector<7x1xf32> to vector<7x340xf32>
    %150 = arith.addf %147, %149 : vector<7x340xf32>
    %cst_64 = arith.constant 0.000000e+00 : f32
    %151 = vector.broadcast %cst_64 : f32 to vector<7x340xf32>
    %152 = arith.maximumf %150, %151 : vector<7x340xf32>
    %c10_65 = arith.constant 10 : index
    %c0_66 = arith.constant 0 : index
    %153 = vector.load %arg1[%c10_65, %c0_66] : memref<11x340xf32, #tpu.memory_space<vmem>>, vector<1x340xf32>
    %154 = vector.broadcast %153 : vector<1x340xf32> to vector<7x340xf32>
    %155 = arith.mulf %152, %154 : vector<7x340xf32>
    %cst_67 = arith.constant 0.000000e+00 : f32
    %156 = vector.broadcast %cst_67 : f32 to vector<8x128xf32>
    %c0_68 = arith.constant 0 : index
    %c0_69 = arith.constant 0 : index
    %157 = vector.load %arg3[%c0_68, %c0_69] : memref<8x512xf32, #tpu.memory_space<vmem>>, vector<8x128xf32>
    tpu.vector_store %arg3[%c0_68, %c0_69], %156 {strides = array<i32>} : memref<8x512xf32, #tpu.memory_space<vmem>>, vector<8x128xf32>,
    %cst_70 = arith.constant 0.000000e+00 : f32
    %158 = vector.broadcast %cst_70 : f32 to vector<8x128xf32>
    %c0_71 = arith.constant 0 : index
    %c384 = arith.constant 384 : index
    %159 = vector.load %arg3[%c0_71, %c384] : memref<8x512xf32, #tpu.memory_space<vmem>>, vector<8x128xf32>
    tpu.vector_store %arg3[%c0_71, %c384], %158 {strides = array<i32>} : memref<8x512xf32, #tpu.memory_space<vmem>>, vector<8x128xf32>,
    %cst_72 = arith.constant 0.000000e+00 : f32
    %160 = vector.broadcast %cst_72 : f32 to vector<1x256xf32>
    %c7_73 = arith.constant 7 : index
    %c128 = arith.constant 128 : index
    %161 = vector.load %arg3[%c7_73, %c128] : memref<8x512xf32, #tpu.memory_space<vmem>>, vector<1x256xf32>
    tpu.vector_store %arg3[%c7_73, %c128], %160 {strides = array<i32>} : memref<8x512xf32, #tpu.memory_space<vmem>>, vector<1x256xf32>,
    %c0_74 = arith.constant 0 : index
    %c128_75 = arith.constant 128 : index
    %162 = vector.load %arg3[%c0_74, %c128_75] : memref<8x512xf32, #tpu.memory_space<vmem>>, vector<7x340xf32>
    tpu.vector_store %arg3[%c0_74, %c128_75], %155 {strides = array<i32>} : memref<8x512xf32, #tpu.memory_space<vmem>>, vector<7x340xf32>,
    %c0_76 = arith.constant 0 : index
    %c87 = arith.constant 87 : index
    %163 = vector.load %arg3[%c0_76, %c87] : memref<8x512xf32, #tpu.memory_space<vmem>>, vector<8x340xf32>
    %c0_77 = arith.constant 0 : index
    %c0_78 = arith.constant 0 : index
    %164 = vector.load %arg4[%c0_77, %c0_78] : memref<96x340xf32, #tpu.memory_space<vmem>>, vector<8x340xf32>
    tpu.vector_store %arg4[%c0_77, %c0_78], %163 {strides = array<i32>} : memref<96x340xf32, #tpu.memory_space<vmem>>, vector<8x340xf32>,
    %c0_79 = arith.constant 0 : index
    %c88 = arith.constant 88 : index
    %165 = vector.load %arg3[%c0_79, %c88] : memref<8x512xf32, #tpu.memory_space<vmem>>, vector<8x340xf32>
    %c8_80 = arith.constant 8 : index
    %c0_81 = arith.constant 0 : index
    %166 = vector.load %arg4[%c8_80, %c0_81] : memref<96x340xf32, #tpu.memory_space<vmem>>, vector<8x340xf32>
    tpu.vector_store %arg4[%c8_80, %c0_81], %165 {strides = array<i32>} : memref<96x340xf32, #tpu.memory_space<vmem>>, vector<8x340xf32>,
    %c0_82 = arith.constant 0 : index
    %c89 = arith.constant 89 : index
    %167 = vector.load %arg3[%c0_82, %c89] : memref<8x512xf32, #tpu.memory_space<vmem>>, vector<8x340xf32>
    %c16_83 = arith.constant 16 : index
    %c0_84 = arith.constant 0 : index
    %168 = vector.load %arg4[%c16_83, %c0_84] : memref<96x340xf32, #tpu.memory_space<vmem>>, vector<8x340xf32>
    tpu.vector_store %arg4[%c16_83, %c0_84], %167 {strides = array<i32>} : memref<96x340xf32, #tpu.memory_space<vmem>>, vector<8x340xf32>,
    %c0_85 = arith.constant 0 : index
    %c107 = arith.constant 107 : index
    %169 = vector.load %arg3[%c0_85, %c107] : memref<8x512xf32, #tpu.memory_space<vmem>>, vector<8x340xf32>
    %c24_86 = arith.constant 24 : index
    %c0_87 = arith.constant 0 : index
    %170 = vector.load %arg4[%c24_86, %c0_87] : memref<96x340xf32, #tpu.memory_space<vmem>>, vector<8x340xf32>
    tpu.vector_store %arg4[%c24_86, %c0_87], %169 {strides = array<i32>} : memref<96x340xf32, #tpu.memory_space<vmem>>, vector<8x340xf32>,
    %c0_88 = arith.constant 0 : index
    %c108 = arith.constant 108 : index
    %171 = vector.load %arg3[%c0_88, %c108] : memref<8x512xf32, #tpu.memory_space<vmem>>, vector<8x340xf32>
    %c32 = arith.constant 32 : index
    %c0_89 = arith.constant 0 : index
    %172 = vector.load %arg4[%c32, %c0_89] : memref<96x340xf32, #tpu.memory_space<vmem>>, vector<8x340xf32>
    tpu.vector_store %arg4[%c32, %c0_89], %171 {strides = array<i32>} : memref<96x340xf32, #tpu.memory_space<vmem>>, vector<8x340xf32>,
    %c0_90 = arith.constant 0 : index
    %c109 = arith.constant 109 : index
    %173 = vector.load %arg3[%c0_90, %c109] : memref<8x512xf32, #tpu.memory_space<vmem>>, vector<8x340xf32>
    %c40_91 = arith.constant 40 : index
    %c0_92 = arith.constant 0 : index
    %174 = vector.load %arg4[%c40_91, %c0_92] : memref<96x340xf32, #tpu.memory_space<vmem>>, vector<8x340xf32>
    tpu.vector_store %arg4[%c40_91, %c0_92], %173 {strides = array<i32>} : memref<96x340xf32, #tpu.memory_space<vmem>>, vector<8x340xf32>,
    %c0_93 = arith.constant 0 : index
    %c127 = arith.constant 127 : index
    %175 = vector.load %arg3[%c0_93, %c127] : memref<8x512xf32, #tpu.memory_space<vmem>>, vector<8x340xf32>
    %c48 = arith.constant 48 : index
    %c0_94 = arith.constant 0 : index
    %176 = vector.load %arg4[%c48, %c0_94] : memref<96x340xf32, #tpu.memory_space<vmem>>, vector<8x340xf32>
    tpu.vector_store %arg4[%c48, %c0_94], %175 {strides = array<i32>} : memref<96x340xf32, #tpu.memory_space<vmem>>, vector<8x340xf32>,
    %c0_95 = arith.constant 0 : index
    %c128_96 = arith.constant 128 : index
    %177 = vector.load %arg3[%c0_95, %c128_96] : memref<8x512xf32, #tpu.memory_space<vmem>>, vector<8x340xf32>
    %c56 = arith.constant 56 : index
    %c0_97 = arith.constant 0 : index
    %178 = vector.load %arg4[%c56, %c0_97] : memref<96x340xf32, #tpu.memory_space<vmem>>, vector<8x340xf32>
    tpu.vector_store %arg4[%c56, %c0_97], %177 {strides = array<i32>} : memref<96x340xf32, #tpu.memory_space<vmem>>, vector<8x340xf32>,
    %c0_98 = arith.constant 0 : index
    %c129 = arith.constant 129 : index
    %179 = vector.load %arg3[%c0_98, %c129] : memref<8x512xf32, #tpu.memory_space<vmem>>, vector<8x340xf32>
    %c64 = arith.constant 64 : index
    %c0_99 = arith.constant 0 : index
    %180 = vector.load %arg4[%c64, %c0_99] : memref<96x340xf32, #tpu.memory_space<vmem>>, vector<8x340xf32>
    tpu.vector_store %arg4[%c64, %c0_99], %179 {strides = array<i32>} : memref<96x340xf32, #tpu.memory_space<vmem>>, vector<8x340xf32>,
    %c0_100 = arith.constant 0 : index
    %c147 = arith.constant 147 : index
    %181 = vector.load %arg3[%c0_100, %c147] : memref<8x512xf32, #tpu.memory_space<vmem>>, vector<8x340xf32>
    %c72 = arith.constant 72 : index
    %c0_101 = arith.constant 0 : index
    %182 = vector.load %arg4[%c72, %c0_101] : memref<96x340xf32, #tpu.memory_space<vmem>>, vector<8x340xf32>
    tpu.vector_store %arg4[%c72, %c0_101], %181 {strides = array<i32>} : memref<96x340xf32, #tpu.memory_space<vmem>>, vector<8x340xf32>,
    %c0_102 = arith.constant 0 : index
    %c148 = arith.constant 148 : index
    %183 = vector.load %arg3[%c0_102, %c148] : memref<8x512xf32, #tpu.memory_space<vmem>>, vector<8x340xf32>
    %c80 = arith.constant 80 : index
    %c0_103 = arith.constant 0 : index
    %184 = vector.load %arg4[%c80, %c0_103] : memref<96x340xf32, #tpu.memory_space<vmem>>, vector<8x340xf32>
    tpu.vector_store %arg4[%c80, %c0_103], %183 {strides = array<i32>} : memref<96x340xf32, #tpu.memory_space<vmem>>, vector<8x340xf32>,
    %c0_104 = arith.constant 0 : index
    %c149 = arith.constant 149 : index
    %185 = vector.load %arg3[%c0_104, %c149] : memref<8x512xf32, #tpu.memory_space<vmem>>, vector<8x340xf32>
    %c88_105 = arith.constant 88 : index
    %c0_106 = arith.constant 0 : index
    %186 = vector.load %arg4[%c88_105, %c0_106] : memref<96x340xf32, #tpu.memory_space<vmem>>, vector<8x340xf32>
    tpu.vector_store %arg4[%c88_105, %c0_106], %185 {strides = array<i32>} : memref<96x340xf32, #tpu.memory_space<vmem>>, vector<8x340xf32>,
    %c0_107 = arith.constant 0 : index
    %c32_108 = arith.constant 32 : index
    %187 = vector.load %arg1[%c0_107, %c32_108] : memref<11x340xf32, #tpu.memory_space<vmem>>, vector<8x96xf32>
    %c0_109 = arith.constant 0 : index
    %c0_110 = arith.constant 0 : index
    %188 = vector.load %arg4[%c0_109, %c0_110] : memref<96x340xf32, #tpu.memory_space<vmem>>, vector<96x340xf32>
    %cst_111 = arith.constant dense<0.000000e+00> : vector<8x340xf32>
    %189 = tpu.matmul %187, %188, %cst_111 {dimension_numbers = #tpu.dot_dimension_numbers<[1], [0], [0], [1], [0, 0, 1, 1], [], []>} : vector<8x96xf32>, vector<96x340xf32>, vector<8x340xf32> -> vector<8x340xf32>
    %c0_112 = arith.constant 0 : index
    %c25 = arith.constant 25 : index
    %190 = vector.load %arg1[%c0_112, %c25] : memref<11x340xf32, #tpu.memory_space<vmem>>, vector<8x1xf32>
    %191 = vector.broadcast %190 : vector<8x1xf32> to vector<8x340xf32>
    %192 = arith.addf %189, %191 : vector<8x340xf32>
    %193 = arith.negf %192 : vector<8x340xf32>
    %194 = math.exp %193 : vector<8x340xf32>
    %cst_113 = arith.constant 1.000000e+00 : f32
    %195 = vector.broadcast %cst_113 : f32 to vector<8x340xf32>
    %196 = arith.addf %195, %194 : vector<8x340xf32>
    %197 = arith.divf %195, %196 : vector<8x340xf32>
    %198 = vector.broadcast %112 : vector<1x340xf32> to vector<8x340xf32>
    %199 = arith.mulf %197, %198 : vector<8x340xf32>
    %c0_114 = arith.constant 0 : index
    %c0_115 = arith.constant 0 : index
    %200 = vector.load %arg2[%c0_114, %c0_115] : memref<8x340xf32, #tpu.memory_space<vmem>>, vector<8x340xf32>
    tpu.vector_store %arg2[%c0_114, %c0_115], %199 {strides = array<i32>} : memref<8x340xf32, #tpu.memory_space<vmem>>, vector<8x340xf32>,
    return
  }
}

</mosaic_0001>

<llo_original>
// kernel: forward.1
$region0: #{forward.1}
  #allocation0 [shape = 'u32[]', space=smem, size = 0x4, offset = 0x4, fixed_abs, tag = 'smem constant byte address 0x4 - core index']
  #allocation1 [shape = 'u32[144,128]{1,0:T(1,128)}', space=vmem, size = 0x12000, scoped, tag = 'internal scratch']
  #allocation2 [shape = 'f32[8,512]{1,0:T(8,128)}', space=vmem, size = 0x4000, scoped, tag = 'scratch operand']
  #allocation3 [shape = 'f32[96,340]{1,0:T(8,128)}', space=vmem, size = 0x24000, scoped, tag = 'scratch operand']
  %s0 = inlined_call_operand.vmem [shape: f32[2,420], index: 0, kind: input, shape index: {}]
  %s1 = inlined_call_operand.vmem [shape: f32[11,340], index: 1, kind: input, shape index: {}]
  %s2 = inlined_call_operand.vmem [shape: f32[8,340], index: 2, kind: output, shape index: {}]
  %s3 = sld [smem:[#allocation0]]
  $region18: #{forward.1} parent=0
    _
  %s5 = ssub.s32 1, %s3
  %s6 = scalar_select 0, %s5, %s3
  // Predicated region
  $region2: #{forward.1} parent=0 // pred_check
    _
  $region3: #{forward.1} parent=0 // pred_check_branch
    %8 = sbr.rel (0) target = $region5
  $region4: #{forward.1} parent=0 // pred_region
    _
  $region5: #{forward.1} parent=0 // pred_fallthru
    _
  // Predicated region
  $region6: #{forward.1} parent=0 // pred_check
    _
  $region7: #{forward.1} parent=0 // pred_check_branch
    %10 = sbr.rel (0) target = $region9
  $region8: #{forward.1} parent=0 // pred_region
    _
  $region9: #{forward.1} parent=0 // pred_fallthru
    _
  %v11 = vld [vmem:[%s1] sm:$0xff]
  %v12 = vld [vmem:[%s1 + $0x18] sm:$0x3]
  %v13 = vld [vmem:[%s0] ss:$2 sm:$0x7]
  %15 = vset.pattern.permute.xlu0 0
  %16 = vperm.xlu0 %15, %v11
  %v17 = vpop.permute.xlu0 %16
  %20 = vset.pattern.permute.xlu0 0
  %21 = vperm.xlu0 %20, %v12
  %v22 = vpop.permute.xlu0 %21
  %v25 = vlaneseq
  %v26 = vshrl.u32 %v25, 7
  %v27 = vsub.s32 0, %v26
  %v28 = vrot.slane %v13, %v27
  %v29 = vlaneseq
  %v30 = vshrl.u32 %v29, 7
  %v31 = vsub.s32 1, %v30
  %v32 = vrot.slane %v13, %v31
  %v33 = vlaneseq
  %v34 = vshrl.u32 %v33, 7
  %v35 = vsub.s32 2, %v34
  %v36 = vrot.slane %v13, %v35
  %v40 = vmul.f32 %v17, %v28
  %v41 = vmul.f32 %v17, %v32
  %v42 = vmul.f32 %v17, %v36
  %v43 = vmul.f32 %v22, %v28
  %v44 = vmul.f32 %v22, %v32
  %v45 = vmul.f32 %v22, %v36
  %46 = vset.pattern.permute.xlu0 1
  %47 = vperm.xlu0 %46, %v11
  %v48 = vpop.permute.xlu0 %47
  %50 = vset.pattern.permute.xlu0 1
  %51 = vperm.xlu0 %50, %v12
  %v52 = vpop.permute.xlu0 %51
  %v54 = vmul.f32 %v48, %v28
  %v55 = vmul.f32 %v48, %v32
  %v56 = vmul.f32 %v48, %v36
  %v57 = vmul.f32 %v52, %v28
  %v58 = vmul.f32 %v52, %v32
  %v59 = vmul.f32 %v52, %v36
  %66 = vrot.lane.b32.xlu0 %v54, 127
  %v67 = vpop.permute.xlu0 %66
  %68 = vrot.lane.b32.xlu0 %v55, 127
  %v69 = vpop.permute.xlu0 %68
  %70 = vrot.lane.b32.xlu0 %v56, 127
  %v71 = vpop.permute.xlu0 %70
  %72 = vrot.lane.b32.xlu0 %v57, 127
  %v73 = vpop.permute.xlu0 %72
  %74 = vrot.lane.b32.xlu0 %v58, 127
  %v75 = vpop.permute.xlu0 %74
  %76 = vrot.lane.b32.xlu0 %v59, 127
  %v77 = vpop.permute.xlu0 %76
  %vm78 = vcmask 1039360
  %v79 = vsel %vm78, %v67, %v69
  %v80 = vsel %vm78, %v69, %v71
  %v81 = vsel %vm78, %v73, %v75
  %v82 = vsel %vm78, %v75, %v77
  %v89 = vadd.f32 %v40, %v79
  %v90 = vadd.f32 %v41, %v80
  %v91 = vadd.f32 %v42, %v71
  %v92 = vadd.f32 %v43, %v81
  %v93 = vadd.f32 %v44, %v82
  %v94 = vadd.f32 %v45, %v77
  %95 = vset.pattern.permute.xlu0 2
  %96 = vperm.xlu0 %95, %v11
  %v97 = vpop.permute.xlu0 %96
  %99 = vset.pattern.permute.xlu0 2
  %100 = vperm.xlu0 %99, %v12
  %v101 = vpop.permute.xlu0 %100
  %v103 = vmul.f32 %v97, %v28
  %v104 = vmul.f32 %v97, %v32
  %v105 = vmul.f32 %v97, %v36
  %v106 = vmul.f32 %v101, %v28
  %v107 = vmul.f32 %v101, %v32
  %v108 = vmul.f32 %v101, %v36
  %115 = vrot.lane.b32.xlu0 %v103, 126
  %v116 = vpop.permute.xlu0 %115
  %117 = vrot.lane.b32.xlu0 %v104, 126
  %v118 = vpop.permute.xlu0 %117
  %119 = vrot.lane.b32.xlu0 %v105, 126
  %v120 = vpop.permute.xlu0 %119
  %121 = vrot.lane.b32.xlu0 %v106, 126
  %v122 = vpop.permute.xlu0 %121
  %123 = vrot.lane.b32.xlu0 %v107, 126
  %v124 = vpop.permute.xlu0 %123
  %125 = vrot.lane.b32.xlu0 %v108, 126
  %v126 = vpop.permute.xlu0 %125
  %vm127 = vcmask 1031168
  %v128 = vsel %vm127, %v116, %v118
  %v129 = vsel %vm127, %v118, %v120
  %v130 = vsel %vm127, %v122, %v124
  %v131 = vsel %vm127, %v124, %v126
  %v138 = vadd.f32 %v89, %v128
  %v139 = vadd.f32 %v90, %v129
  %v140 = vadd.f32 %v91, %v120
  %v141 = vadd.f32 %v92, %v130
  %v142 = vadd.f32 %v93, %v131
  %v143 = vadd.f32 %v94, %v126
  %144 = vset.pattern.permute.xlu0 3
  %145 = vperm.xlu0 %144, %v11
  %v146 = vpop.permute.xlu0 %145
  %148 = vset.pattern.permute.xlu0 3
  %149 = vperm.xlu0 %148, %v12
  %v150 = vpop.permute.xlu0 %149
  %v152 = vmul.f32 %v146, %v28
  %v153 = vmul.f32 %v146, %v32
  %v154 = vmul.f32 %v146, %v36
  %v155 = vmul.f32 %v150, %v28
  %v156 = vmul.f32 %v150, %v32
  %v157 = vmul.f32 %v150, %v36
  %164 = vrot.lane.b32.xlu0 %v152, 125
  %v165 = vpop.permute.xlu0 %164
  %166 = vrot.lane.b32.xlu0 %v153, 125
  %v167 = vpop.permute.xlu0 %166
  %168 = vrot.lane.b32.xlu0 %v154, 125
  %v169 = vpop.permute.xlu0 %168
  %170 = vrot.lane.b32.xlu0 %v155, 125
  %v171 = vpop.permute.xlu0 %170
  %172 = vrot.lane.b32.xlu0 %v156, 125
  %v173 = vpop.permute.xlu0 %172
  %174 = vrot.lane.b32.xlu0 %v157, 125
  %v175 = vpop.permute.xlu0 %174
  %vm176 = vcmask 1022976
  %v177 = vsel %vm176, %v165, %v167
  %v178 = vsel %vm176, %v167, %v169
  %v179 = vsel %vm176, %v171, %v173
  %v180 = vsel %vm176, %v173, %v175
  %v187 = vadd.f32 %v138, %v177
  %v188 = vadd.f32 %v139, %v178
  %v189 = vadd.f32 %v140, %v169
  %v190 = vadd.f32 %v141, %v179
  %v191 = vadd.f32 %v142, %v180
  %v192 = vadd.f32 %v143, %v175
  %193 = vset.pattern.permute.xlu0 4
  %194 = vperm.xlu0 %193, %v11
  %v195 = vpop.permute.xlu0 %194
  %197 = vset.pattern.permute.xlu0 4
  %198 = vperm.xlu0 %197, %v12
  %v199 = vpop.permute.xlu0 %198
  %v201 = vmul.f32 %v195, %v28
  %v202 = vmul.f32 %v195, %v32
  %v203 = vmul.f32 %v195, %v36
  %v204 = vmul.f32 %v199, %v28
  %v205 = vmul.f32 %v199, %v32
  %v206 = vmul.f32 %v199, %v36
  %207 = vset.pattern.permute.xlu0 5
  %208 = vperm.xlu0 %207, %v11
  %v209 = vpop.permute.xlu0 %208
  %211 = vset.pattern.permute.xlu0 5
  %212 = vperm.xlu0 %211, %v12
  %v213 = vpop.permute.xlu0 %212
  %v215 = vmul.f32 %v209, %v28
  %v216 = vmul.f32 %v209, %v32
  %v217 = vmul.f32 %v209, %v36
  %v218 = vmul.f32 %v213, %v28
  %v219 = vmul.f32 %v213, %v32
  %v220 = vmul.f32 %v213, %v36
  %227 = vrot.lane.b32.xlu0 %v215, 127
  %v228 = vpop.permute.xlu0 %227
  %229 = vrot.lane.b32.xlu0 %v216, 127
  %v230 = vpop.permute.xlu0 %229
  %231 = vrot.lane.b32.xlu0 %v217, 127
  %v232 = vpop.permute.xlu0 %231
  %233 = vrot.lane.b32.xlu0 %v218, 127
  %v234 = vpop.permute.xlu0 %233
  %235 = vrot.lane.b32.xlu0 %v219, 127
  %v236 = vpop.permute.xlu0 %235
  %237 = vrot.lane.b32.xlu0 %v220, 127
  %v238 = vpop.permute.xlu0 %237
  %v239 = vsel %vm78, %v228, %v230
  %v240 = vsel %vm78, %v230, %v232
  %v241 = vsel %vm78, %v234, %v236
  %v242 = vsel %vm78, %v236, %v238
  %v249 = vadd.f32 %v201, %v239
  %v250 = vadd.f32 %v202, %v240
  %v251 = vadd.f32 %v203, %v232
  %v252 = vadd.f32 %v204, %v241
  %v253 = vadd.f32 %v205, %v242
  %v254 = vadd.f32 %v206, %v238
  %255 = vset.pattern.permute.xlu0 6
  %256 = vperm.xlu0 %255, %v11
  %v257 = vpop.permute.xlu0 %256
  %259 = vset.pattern.permute.xlu0 6
  %260 = vperm.xlu0 %259, %v12
  %v261 = vpop.permute.xlu0 %260
  %v263 = vmul.f32 %v257, %v28
  %v264 = vmul.f32 %v257, %v32
  %v265 = vmul.f32 %v257, %v36
  %v266 = vmul.f32 %v261, %v28
  %v267 = vmul.f32 %v261, %v32
  %v268 = vmul.f32 %v261, %v36
  %275 = vrot.lane.b32.xlu0 %v263, 126
  %v276 = vpop.permute.xlu0 %275
  %277 = vrot.lane.b32.xlu0 %v264, 126
  %v278 = vpop.permute.xlu0 %277
  %279 = vrot.lane.b32.xlu0 %v265, 126
  %v280 = vpop.permute.xlu0 %279
  %281 = vrot.lane.b32.xlu0 %v266, 126
  %v282 = vpop.permute.xlu0 %281
  %283 = vrot.lane.b32.xlu0 %v267, 126
  %v284 = vpop.permute.xlu0 %283
  %285 = vrot.lane.b32.xlu0 %v268, 126
  %v286 = vpop.permute.xlu0 %285
  %v287 = vsel %vm127, %v276, %v278
  %v288 = vsel %vm127, %v278, %v280
  %v289 = vsel %vm127, %v282, %v284
  %v290 = vsel %vm127, %v284, %v286
  %v297 = vadd.f32 %v249, %v287
  %v298 = vadd.f32 %v250, %v288
  %v299 = vadd.f32 %v251, %v280
  %v300 = vadd.f32 %v252, %v289
  %v301 = vadd.f32 %v253, %v290
  %v302 = vadd.f32 %v254, %v286
  %303 = vset.pattern.permute.xlu0 7
  %304 = vperm.xlu0 %303, %v11
  %v305 = vpop.permute.xlu0 %304
  %307 = vset.pattern.permute.xlu0 7
  %308 = vperm.xlu0 %307, %v12
  %v309 = vpop.permute.xlu0 %308
  %v311 = vmul.f32 %v305, %v28
  %v312 = vmul.f32 %v305, %v32
  %v313 = vmul.f32 %v305, %v36
  %v314 = vmul.f32 %v309, %v28
  %v315 = vmul.f32 %v309, %v32
  %v316 = vmul.f32 %v309, %v36
  %323 = vrot.lane.b32.xlu0 %v311, 125
  %v324 = vpop.permute.xlu0 %323
  %325 = vrot.lane.b32.xlu0 %v312, 125
  %v326 = vpop.permute.xlu0 %325
  %327 = vrot.lane.b32.xlu0 %v313, 125
  %v328 = vpop.permute.xlu0 %327
  %329 = vrot.lane.b32.xlu0 %v314, 125
  %v330 = vpop.permute.xlu0 %329
  %331 = vrot.lane.b32.xlu0 %v315, 125
  %v332 = vpop.permute.xlu0 %331
  %333 = vrot.lane.b32.xlu0 %v316, 125
  %v334 = vpop.permute.xlu0 %333
  %v335 = vsel %vm176, %v324, %v326
  %v336 = vsel %vm176, %v326, %v328
  %v337 = vsel %vm176, %v330, %v332
  %v338 = vsel %vm176, %v332, %v334
  %v345 = vadd.f32 %v297, %v335
  %v346 = vadd.f32 %v298, %v336
  %v347 = vadd.f32 %v299, %v328
  %v348 = vadd.f32 %v300, %v337
  %v349 = vadd.f32 %v301, %v338
  %v350 = vadd.f32 %v302, %v334
  %351 = vset.pattern.permute.xlu0 8
  %352 = vperm.xlu0 %351, %v11
  %v353 = vpop.permute.xlu0 %352
  %355 = vset.pattern.permute.xlu0 8
  %356 = vperm.xlu0 %355, %v12
  %v357 = vpop.permute.xlu0 %356
  %v359 = vmul.f32 %v353, %v28
  %v360 = vmul.f32 %v353, %v32
  %v361 = vmul.f32 %v353, %v36
  %v362 = vmul.f32 %v357, %v28
  %v363 = vmul.f32 %v357, %v32
  %v364 = vmul.f32 %v357, %v36
  %365 = vset.pattern.permute.xlu0 9
  %366 = vperm.xlu0 %365, %v11
  %v367 = vpop.permute.xlu0 %366
  %369 = vset.pattern.permute.xlu0 9
  %370 = vperm.xlu0 %369, %v12
  %v371 = vpop.permute.xlu0 %370
  %v373 = vmul.f32 %v367, %v28
  %v374 = vmul.f32 %v367, %v32
  %v375 = vmul.f32 %v367, %v36
  %v376 = vmul.f32 %v371, %v28
  %v377 = vmul.f32 %v371, %v32
  %v378 = vmul.f32 %v371, %v36
  %385 = vrot.lane.b32.xlu0 %v373, 127
  %v386 = vpop.permute.xlu0 %385
  %387 = vrot.lane.b32.xlu0 %v374, 127
  %v388 = vpop.permute.xlu0 %387
  %389 = vrot.lane.b32.xlu0 %v375, 127
  %v390 = vpop.permute.xlu0 %389
  %391 = vrot.lane.b32.xlu0 %v376, 127
  %v392 = vpop.permute.xlu0 %391
  %393 = vrot.lane.b32.xlu0 %v377, 127
  %v394 = vpop.permute.xlu0 %393
  %395 = vrot.lane.b32.xlu0 %v378, 127
  %v396 = vpop.permute.xlu0 %395
  %v397 = vsel %vm78, %v386, %v388
  %v398 = vsel %vm78, %v388, %v390
  %v399 = vsel %vm78, %v392, %v394
  %v400 = vsel %vm78, %v394, %v396
  %v407 = vadd.f32 %v359, %v397
  %v408 = vadd.f32 %v360, %v398
  %v409 = vadd.f32 %v361, %v390
  %v410 = vadd.f32 %v362, %v399
  %v411 = vadd.f32 %v363, %v400
  %v412 = vadd.f32 %v364, %v396
  %413 = vset.pattern.permute.xlu0 10
  %414 = vperm.xlu0 %413, %v11
  %v415 = vpop.permute.xlu0 %414
  %417 = vset.pattern.permute.xlu0 10
  %418 = vperm.xlu0 %417, %v12
  %v419 = vpop.permute.xlu0 %418
  %v421 = vmul.f32 %v415, %v28
  %v422 = vmul.f32 %v415, %v32
  %v423 = vmul.f32 %v415, %v36
  %v424 = vmul.f32 %v419, %v28
  %v425 = vmul.f32 %v419, %v32
  %v426 = vmul.f32 %v419, %v36
  %433 = vrot.lane.b32.xlu0 %v421, 126
  %v434 = vpop.permute.xlu0 %433
  %435 = vrot.lane.b32.xlu0 %v422, 126
  %v436 = vpop.permute.xlu0 %435
  %437 = vrot.lane.b32.xlu0 %v423, 126
  %v438 = vpop.permute.xlu0 %437
  %439 = vrot.lane.b32.xlu0 %v424, 126
  %v440 = vpop.permute.xlu0 %439
  %441 = vrot.lane.b32.xlu0 %v425, 126
  %v442 = vpop.permute.xlu0 %441
  %443 = vrot.lane.b32.xlu0 %v426, 126
  %v444 = vpop.permute.xlu0 %443
  %v445 = vsel %vm127, %v434, %v436
  %v446 = vsel %vm127, %v436, %v438
  %v447 = vsel %vm127, %v440, %v442
  %v448 = vsel %vm127, %v442, %v444
  %v455 = vadd.f32 %v407, %v445
  %v456 = vadd.f32 %v408, %v446
  %v457 = vadd.f32 %v409, %v438
  %v458 = vadd.f32 %v410, %v447
  %v459 = vadd.f32 %v411, %v448
  %v460 = vadd.f32 %v412, %v444
  %461 = vset.pattern.permute.xlu0 11
  %462 = vperm.xlu0 %461, %v11
  %v463 = vpop.permute.xlu0 %462
  %465 = vset.pattern.permute.xlu0 11
  %466 = vperm.xlu0 %465, %v12
  %v467 = vpop.permute.xlu0 %466
  %v469 = vmul.f32 %v463, %v28
  %v470 = vmul.f32 %v463, %v32
  %v471 = vmul.f32 %v463, %v36
  %v472 = vmul.f32 %v467, %v28
  %v473 = vmul.f32 %v467, %v32
  %v474 = vmul.f32 %v467, %v36
  %481 = vrot.lane.b32.xlu0 %v469, 125
  %v482 = vpop.permute.xlu0 %481
  %483 = vrot.lane.b32.xlu0 %v470, 125
  %v484 = vpop.permute.xlu0 %483
  %485 = vrot.lane.b32.xlu0 %v471, 125
  %v486 = vpop.permute.xlu0 %485
  %487 = vrot.lane.b32.xlu0 %v472, 125
  %v488 = vpop.permute.xlu0 %487
  %489 = vrot.lane.b32.xlu0 %v473, 125
  %v490 = vpop.permute.xlu0 %489
  %491 = vrot.lane.b32.xlu0 %v474, 125
  %v492 = vpop.permute.xlu0 %491
  %v493 = vsel %vm176, %v482, %v484
  %v494 = vsel %vm176, %v484, %v486
  %v495 = vsel %vm176, %v488, %v490
  %v496 = vsel %vm176, %v490, %v492
  %v503 = vadd.f32 %v455, %v493
  %v504 = vadd.f32 %v456, %v494
  %v505 = vadd.f32 %v457, %v486
  %v506 = vadd.f32 %v458, %v495
  %v507 = vadd.f32 %v459, %v496
  %v508 = vadd.f32 %v460, %v492
  %v509 = vld [vmem:[%s0] ss:$2 sm:$0xf]
  %510 = vset.pattern.permute.xlu0 12
  %511 = vperm.xlu0 %510, %v11
  %v512 = vpop.permute.xlu0 %511
  %514 = vset.pattern.permute.xlu0 12
  %515 = vperm.xlu0 %514, %v12
  %v516 = vpop.permute.xlu0 %515
  %v519 = vlaneseq
  %v520 = vshrl.u32 %v519, 7
  %v521 = vsub.s32 0, %v520
  %v522 = vrot.slane %v509, %v521
  %v523 = vlaneseq
  %v524 = vshrl.u32 %v523, 7
  %v525 = vsub.s32 1, %v524
  %v526 = vrot.slane %v509, %v525
  %v527 = vlaneseq
  %v528 = vshrl.u32 %v527, 7
  %v529 = vsub.s32 2, %v528
  %v530 = vrot.slane %v509, %v529
  %v531 = vlaneseq
  %v532 = vshrl.u32 %v531, 7
  %v533 = vsub.s32 3, %v532
  %v534 = vrot.slane %v509, %v533
  %v539 = vmul.f32 %v512, %v522
  %v540 = vmul.f32 %v512, %v526
  %v541 = vmul.f32 %v512, %v530
  %v542 = vmul.f32 %v512, %v534
  %v543 = vmul.f32 %v516, %v522
  %v544 = vmul.f32 %v516, %v526
  %v545 = vmul.f32 %v516, %v530
  %v546 = vmul.f32 %v516, %v534
  %547 = vset.pattern.permute.xlu0 13
  %548 = vperm.xlu0 %547, %v11
  %v549 = vpop.permute.xlu0 %548
  %551 = vset.pattern.permute.xlu0 13
  %552 = vperm.xlu0 %551, %v12
  %v553 = vpop.permute.xlu0 %552
  %v555 = vmul.f32 %v549, %v522
  %v556 = vmul.f32 %v549, %v526
  %v557 = vmul.f32 %v549, %v530
  %v558 = vmul.f32 %v549, %v534
  %v559 = vmul.f32 %v553, %v522
  %v560 = vmul.f32 %v553, %v526
  %v561 = vmul.f32 %v553, %v530
  %v562 = vmul.f32 %v553, %v534
  %571 = vrot.lane.b32.xlu0 %v555, 127
  %v572 = vpop.permute.xlu0 %571
  %573 = vrot.lane.b32.xlu0 %v556, 127
  %v574 = vpop.permute.xlu0 %573
  %575 = vrot.lane.b32.xlu0 %v557, 127
  %v576 = vpop.permute.xlu0 %575
  %577 = vrot.lane.b32.xlu0 %v558, 127
  %v578 = vpop.permute.xlu0 %577
  %579 = vrot.lane.b32.xlu0 %v559, 127
  %v580 = vpop.permute.xlu0 %579
  %581 = vrot.lane.b32.xlu0 %v560, 127
  %v582 = vpop.permute.xlu0 %581
  %583 = vrot.lane.b32.xlu0 %v561, 127
  %v584 = vpop.permute.xlu0 %583
  %585 = vrot.lane.b32.xlu0 %v562, 127
  %v586 = vpop.permute.xlu0 %585
  %v587 = vsel %vm78, %v572, %v574
  %v588 = vsel %vm78, %v574, %v576
  %v589 = vsel %vm78, %v576, %v578
  %v590 = vsel %vm78, %v580, %v582
  %v591 = vsel %vm78, %v582, %v584
  %v592 = vsel %vm78, %v584, %v586
  %v601 = vadd.f32 %v539, %v587
  %v602 = vadd.f32 %v540, %v588
  %v603 = vadd.f32 %v541, %v589
  %v604 = vadd.f32 %v542, %v578
  %v605 = vadd.f32 %v543, %v590
  %v606 = vadd.f32 %v544, %v591
  %v607 = vadd.f32 %v545, %v592
  %v608 = vadd.f32 %v546, %v586
  %609 = vset.pattern.permute.xlu0 14
  %610 = vperm.xlu0 %609, %v11
  %v611 = vpop.permute.xlu0 %610
  %613 = vset.pattern.permute.xlu0 14
  %614 = vperm.xlu0 %613, %v12
  %v615 = vpop.permute.xlu0 %614
  %v617 = vmul.f32 %v611, %v522
  %v618 = vmul.f32 %v611, %v526
  %v619 = vmul.f32 %v611, %v530
  %v620 = vmul.f32 %v611, %v534
  %v621 = vmul.f32 %v615, %v522
  %v622 = vmul.f32 %v615, %v526
  %v623 = vmul.f32 %v615, %v530
  %v624 = vmul.f32 %v615, %v534
  %633 = vrot.lane.b32.xlu0 %v617, 126
  %v634 = vpop.permute.xlu0 %633
  %635 = vrot.lane.b32.xlu0 %v618, 126
  %v636 = vpop.permute.xlu0 %635
  %637 = vrot.lane.b32.xlu0 %v619, 126
  %v638 = vpop.permute.xlu0 %637
  %639 = vrot.lane.b32.xlu0 %v620, 126
  %v640 = vpop.permute.xlu0 %639
  %641 = vrot.lane.b32.xlu0 %v621, 126
  %v642 = vpop.permute.xlu0 %641
  %643 = vrot.lane.b32.xlu0 %v622, 126
  %v644 = vpop.permute.xlu0 %643
  %645 = vrot.lane.b32.xlu0 %v623, 126
  %v646 = vpop.permute.xlu0 %645
  %647 = vrot.lane.b32.xlu0 %v624, 126
  %v648 = vpop.permute.xlu0 %647
  %v649 = vsel %vm127, %v634, %v636
  %v650 = vsel %vm127, %v636, %v638
  %v651 = vsel %vm127, %v638, %v640
  %v652 = vsel %vm127, %v642, %v644
  %v653 = vsel %vm127, %v644, %v646
  %v654 = vsel %vm127, %v646, %v648
  %v663 = vadd.f32 %v601, %v649
  %v664 = vadd.f32 %v602, %v650
  %v665 = vadd.f32 %v603, %v651
  %v666 = vadd.f32 %v604, %v640
  %v667 = vadd.f32 %v605, %v652
  %v668 = vadd.f32 %v606, %v653
  %v669 = vadd.f32 %v607, %v654
  %v670 = vadd.f32 %v608, %v648
  %671 = vset.pattern.permute.xlu0 15
  %672 = vperm.xlu0 %671, %v11
  %v673 = vpop.permute.xlu0 %672
  %675 = vset.pattern.permute.xlu0 15
  %676 = vperm.xlu0 %675, %v12
  %v677 = vpop.permute.xlu0 %676
  %v679 = vmul.f32 %v673, %v522
  %v680 = vmul.f32 %v673, %v526
  %v681 = vmul.f32 %v673, %v530
  %v682 = vmul.f32 %v673, %v534
  %v683 = vmul.f32 %v677, %v522
  %v684 = vmul.f32 %v677, %v526
  %v685 = vmul.f32 %v677, %v530
  %v686 = vmul.f32 %v677, %v534
  %695 = vrot.lane.b32.xlu0 %v679, 125
  %v696 = vpop.permute.xlu0 %695
  %697 = vrot.lane.b32.xlu0 %v680, 125
  %v698 = vpop.permute.xlu0 %697
  %699 = vrot.lane.b32.xlu0 %v681, 125
  %v700 = vpop.permute.xlu0 %699
  %701 = vrot.lane.b32.xlu0 %v682, 125
  %v702 = vpop.permute.xlu0 %701
  %703 = vrot.lane.b32.xlu0 %v683, 125
  %v704 = vpop.permute.xlu0 %703
  %705 = vrot.lane.b32.xlu0 %v684, 125
  %v706 = vpop.permute.xlu0 %705
  %707 = vrot.lane.b32.xlu0 %v685, 125
  %v708 = vpop.permute.xlu0 %707
  %709 = vrot.lane.b32.xlu0 %v686, 125
  %v710 = vpop.permute.xlu0 %709
  %v711 = vsel %vm176, %v696, %v698
  %v712 = vsel %vm176, %v698, %v700
  %v713 = vsel %vm176, %v700, %v702
  %v714 = vsel %vm176, %v704, %v706
  %v715 = vsel %vm176, %v706, %v708
  %v716 = vsel %vm176, %v708, %v710
  %v725 = vadd.f32 %v663, %v711
  %v726 = vadd.f32 %v664, %v712
  %v727 = vadd.f32 %v665, %v713
  %v728 = vadd.f32 %v666, %v702
  %v729 = vadd.f32 %v667, %v714
  %v730 = vadd.f32 %v668, %v715
  %v731 = vadd.f32 %v669, %v716
  %v732 = vadd.f32 %v670, %v710
  %739 = vrot.lane.b32.xlu0 %v345, 108
  %v740 = vpop.permute.xlu0 %739
  %741 = vrot.lane.b32.xlu0 %v346, 108
  %v742 = vpop.permute.xlu0 %741
  %743 = vrot.lane.b32.xlu0 %v347, 108
  %v744 = vpop.permute.xlu0 %743
  %745 = vrot.lane.b32.xlu0 %v348, 108
  %v746 = vpop.permute.xlu0 %745
  %747 = vrot.lane.b32.xlu0 %v349, 108
  %v748 = vpop.permute.xlu0 %747
  %749 = vrot.lane.b32.xlu0 %v350, 108
  %v750 = vpop.permute.xlu0 %749
  %vm751 = vcmask 883712
  %v752 = vsel %vm751, %v740, %v742
  %v753 = vsel %vm751, %v742, %v744
  %v754 = vsel %vm751, %v746, %v748
  %v755 = vsel %vm751, %v748, %v750
  %v762 = vadd.f32 %v187, %v752
  %v763 = vadd.f32 %v188, %v753
  %v764 = vadd.f32 %v189, %v744
  %v765 = vadd.f32 %v190, %v754
  %v766 = vadd.f32 %v191, %v755
  %v767 = vadd.f32 %v192, %v750
  %776 = vrot.lane.b32.xlu0 %v725, 108
  %v777 = vpop.permute.xlu0 %776
  %778 = vrot.lane.b32.xlu0 %v726, 108
  %v779 = vpop.permute.xlu0 %778
  %780 = vrot.lane.b32.xlu0 %v727, 108
  %v781 = vpop.permute.xlu0 %780
  %782 = vrot.lane.b32.xlu0 %v728, 108
  %v783 = vpop.permute.xlu0 %782
  %784 = vrot.lane.b32.xlu0 %v729, 108
  %v785 = vpop.permute.xlu0 %784
  %786 = vrot.lane.b32.xlu0 %v730, 108
  %v787 = vpop.permute.xlu0 %786
  %788 = vrot.lane.b32.xlu0 %v731, 108
  %v789 = vpop.permute.xlu0 %788
  %790 = vrot.lane.b32.xlu0 %v732, 108
  %v791 = vpop.permute.xlu0 %790
  %v792 = vsel %vm751, %v777, %v779
  %v793 = vsel %vm751, %v779, %v781
  %v794 = vsel %vm751, %v781, %v783
  %v795 = vsel %vm751, %v785, %v787
  %v796 = vsel %vm751, %v787, %v789
  %v797 = vsel %vm751, %v789, %v791
  %v804 = vadd.f32 %v503, %v792
  %v805 = vadd.f32 %v504, %v793
  %v806 = vadd.f32 %v505, %v794
  %v807 = vadd.f32 %v506, %v795
  %v808 = vadd.f32 %v507, %v796
  %v809 = vadd.f32 %v508, %v797
  %816 = vrot.lane.b32.xlu0 %v804, 88
  %v817 = vpop.permute.xlu0 %816
  %818 = vrot.lane.b32.xlu0 %v805, 88
  %v819 = vpop.permute.xlu0 %818
  %820 = vrot.lane.b32.xlu0 %v806, 88
  %v821 = vpop.permute.xlu0 %820
  %822 = vrot.lane.b32.xlu0 %v807, 88
  %v823 = vpop.permute.xlu0 %822
  %824 = vrot.lane.b32.xlu0 %v808, 88
  %v825 = vpop.permute.xlu0 %824
  %826 = vrot.lane.b32.xlu0 %v809, 88
  %v827 = vpop.permute.xlu0 %826
  %vm828 = vcmask 719872
  %v829 = vsel %vm828, %v817, %v819
  %v830 = vsel %vm828, %v819, %v821
  %v831 = vsel %vm828, %v823, %v825
  %v832 = vsel %vm828, %v825, %v827
  %v839 = vadd.f32 %v762, %v829
  %v840 = vadd.f32 %v763, %v830
  %v841 = vadd.f32 %v764, %v821
  %v842 = vadd.f32 %v765, %v831
  %v843 = vadd.f32 %v766, %v832
  %v844 = vadd.f32 %v767, %v827
  %845 = vset.pattern.permute.xlu0 16
  %846 = vperm.xlu0 %845, %v11
  %v847 = vpop.permute.xlu0 %846
  %849 = vset.pattern.permute.xlu0 16
  %850 = vperm.xlu0 %849, %v12
  %v851 = vpop.permute.xlu0 %850
  %v853 = vadd.f32 %v839, %v847
  %v854 = vadd.f32 %v840, %v847
  %v855 = vadd.f32 %v841, %v847
  %v856 = vadd.f32 %v842, %v851
  %v857 = vadd.f32 %v843, %v851
  %v858 = vadd.f32 %v844, %v851
  %v859 = vmax.f32 %v853, 0.0
  %v860 = vmax.f32 %v854, 0.0
  %v861 = vmax.f32 %v855, 0.0
  %v862 = vmax.f32 %v856, 0.0
  %v863 = vmax.f32 %v857, 0.0
  %v864 = vmax.f32 %v858, 0.0
  %865 = vset.pattern.permute.xlu0 17
  %866 = vperm.xlu0 %865, %v11
  %v867 = vpop.permute.xlu0 %866
  %869 = vset.pattern.permute.xlu0 17
  %870 = vperm.xlu0 %869, %v12
  %v871 = vpop.permute.xlu0 %870
  %v873 = vmul.f32 %v859, %v867
  %v874 = vmul.f32 %v860, %v867
  %v875 = vmul.f32 %v861, %v867
  %v876 = vmul.f32 %v862, %v871
  %v877 = vmul.f32 %v863, %v871
  %v878 = vmul.f32 %v864, %v871
  %vm879 = vcmask 1041408
  %v880 = vsel %vm879, %v876, 0.0
  %v881 = vadd.f32 %v873, %v880
  %v882 = vrot.slane %v881, 4
  %v883 = vadd.f32 %v881, %v882
  %v884 = vrot.slane %v883, 2
  %v885 = vadd.f32 %v883, %v884
  %v886 = vrot.slane %v885, 1
  %v887 = vadd.f32 %v885, %v886
  %v888 = vsel %vm879, %v877, 0.0
  %v889 = vadd.f32 %v874, %v888
  %v890 = vrot.slane %v889, 4
  %v891 = vadd.f32 %v889, %v890
  %v892 = vrot.slane %v891, 2
  %v893 = vadd.f32 %v891, %v892
  %v894 = vrot.slane %v893, 1
  %v895 = vadd.f32 %v893, %v894
  %vm896 = vcmask 687104
  %v897 = vsel %vm896, %v875, 0.0
  %vm898 = vcmask 680960
  %v899 = vsel %vm898, %v878, 0.0
  %v900 = vadd.f32 %v897, %v899
  %v901 = vrot.slane %v900, 4
  %v902 = vadd.f32 %v900, %v901
  %v903 = vrot.slane %v902, 2
  %v904 = vadd.f32 %v902, %v903
  %v905 = vrot.slane %v904, 1
  %v906 = vadd.f32 %v904, %v905
  %v907 = vld [vmem:[%s1] ss:$0 sm:$0xff]
  %909 = vset.pattern.permute.xlu0 26
  %910 = vperm.xlu0 %909, %v907
  %v911 = vpop.permute.xlu0 %910
  %v913 = vadd.f32 %v887, %v911
  %v914 = vadd.f32 %v895, %v911
  %v915 = vadd.f32 %v906, %v911
  %v916 = vxor.u32 %v913, 2147483648
  %v917 = vxor.u32 %v914, 2147483648
  %v918 = vxor.u32 %v915, 2147483648
  %v919 = vmul.f32 %v916, 1.442695
  %v920 = vpow.pop %v919
  %v921 = vmul.f32 %v917, 1.442695
  %v922 = vpow.pop %v921
  %v923 = vmul.f32 %v918, 1.442695
  %v924 = vpow.pop %v923
  %v925 = vadd.f32 %v920, 1.0
  %v926 = vadd.f32 %v922, 1.0
  %v927 = vadd.f32 %v924, 1.0
  %v928 = vrcp.pop %v925
  %v929 = vmul.f32 1.0, %v928
  %v930 = vrcp.pop %v926
  %v931 = vmul.f32 1.0, %v930
  %v932 = vrcp.pop %v927
  %v933 = vmul.f32 1.0, %v932
  %v934 = vld [vmem:[%s1] sm:$0x7f]
  %s935 = scalar_lea.vmem %s0, 1
  %v936 = vld [vmem:[%s935] ss:$2 sm:$0x7]
  %938 = vset.pattern.permute.xlu0 18
  %939 = vperm.xlu0 %938, %v934
  %v940 = vpop.permute.xlu0 %939
  %v943 = vlaneseq
  %v944 = vshrl.u32 %v943, 7
  %v945 = vsub.s32 0, %v944
  %v946 = vrot.slane %v936, %v945
  %v947 = vlaneseq
  %v948 = vshrl.u32 %v947, 7
  %v949 = vsub.s32 1, %v948
  %v950 = vrot.slane %v936, %v949
  %v951 = vlaneseq
  %v952 = vshrl.u32 %v951, 7
  %v953 = vsub.s32 2, %v952
  %v954 = vrot.slane %v936, %v953
  %v958 = vmul.f32 %v940, %v946
  %v959 = vmul.f32 %v940, %v950
  %v960 = vmul.f32 %v940, %v954
  %961 = vset.pattern.permute.xlu0 19
  %962 = vperm.xlu0 %961, %v934
  %v963 = vpop.permute.xlu0 %962
  %v965 = vmul.f32 %v963, %v946
  %v966 = vmul.f32 %v963, %v950
  %v967 = vmul.f32 %v963, %v954
  %971 = vrot.lane.b32.xlu0 %v965, 127
  %v972 = vpop.permute.xlu0 %971
  %973 = vrot.lane.b32.xlu0 %v966, 127
  %v974 = vpop.permute.xlu0 %973
  %975 = vrot.lane.b32.xlu0 %v967, 127
  %v976 = vpop.permute.xlu0 %975
  %v977 = vsel %vm78, %v972, %v974
  %v978 = vsel %vm78, %v974, %v976
  %v982 = vadd.f32 %v958, %v977
  %v983 = vadd.f32 %v959, %v978
  %v984 = vadd.f32 %v960, %v976
  %985 = vset.pattern.permute.xlu0 20
  %986 = vperm.xlu0 %985, %v934
  %v987 = vpop.permute.xlu0 %986
  %v989 = vmul.f32 %v987, %v946
  %v990 = vmul.f32 %v987, %v950
  %v991 = vmul.f32 %v987, %v954
  %995 = vrot.lane.b32.xlu0 %v989, 126
  %v996 = vpop.permute.xlu0 %995
  %997 = vrot.lane.b32.xlu0 %v990, 126
  %v998 = vpop.permute.xlu0 %997
  %999 = vrot.lane.b32.xlu0 %v991, 126
  %v1000 = vpop.permute.xlu0 %999
  %v1001 = vsel %vm127, %v996, %v998
  %v1002 = vsel %vm127, %v998, %v1000
  %v1006 = vadd.f32 %v982, %v1001
  %v1007 = vadd.f32 %v983, %v1002
  %v1008 = vadd.f32 %v984, %v1000
  %1009 = vset.pattern.permute.xlu0 21
  %1010 = vperm.xlu0 %1009, %v934
  %v1011 = vpop.permute.xlu0 %1010
  %v1013 = vmul.f32 %v1011, %v946
  %v1014 = vmul.f32 %v1011, %v950
  %v1015 = vmul.f32 %v1011, %v954
  %1016 = vset.pattern.permute.xlu0 22
  %1017 = vperm.xlu0 %1016, %v934
  %v1018 = vpop.permute.xlu0 %1017
  %v1020 = vmul.f32 %v1018, %v946
  %v1021 = vmul.f32 %v1018, %v950
  %v1022 = vmul.f32 %v1018, %v954
  %1026 = vrot.lane.b32.xlu0 %v1020, 127
  %v1027 = vpop.permute.xlu0 %1026
  %1028 = vrot.lane.b32.xlu0 %v1021, 127
  %v1029 = vpop.permute.xlu0 %1028
  %1030 = vrot.lane.b32.xlu0 %v1022, 127
  %v1031 = vpop.permute.xlu0 %1030
  %v1032 = vsel %vm78, %v1027, %v1029
  %v1033 = vsel %vm78, %v1029, %v1031
  %v1037 = vadd.f32 %v1013, %v1032
  %v1038 = vadd.f32 %v1014, %v1033
  %v1039 = vadd.f32 %v1015, %v1031
  %1040 = vset.pattern.permute.xlu0 23
  %1041 = vperm.xlu0 %1040, %v934
  %v1042 = vpop.permute.xlu0 %1041
  %v1044 = vmul.f32 %v1042, %v946
  %v1045 = vmul.f32 %v1042, %v950
  %v1046 = vmul.f32 %v1042, %v954
  %1050 = vrot.lane.b32.xlu0 %v1044, 126
  %v1051 = vpop.permute.xlu0 %1050
  %1052 = vrot.lane.b32.xlu0 %v1045, 126
  %v1053 = vpop.permute.xlu0 %1052
  %1054 = vrot.lane.b32.xlu0 %v1046, 126
  %v1055 = vpop.permute.xlu0 %1054
  %v1056 = vsel %vm127, %v1051, %v1053
  %v1057 = vsel %vm127, %v1053, %v1055
  %v1061 = vadd.f32 %v1037, %v1056
  %v1062 = vadd.f32 %v1038, %v1057
  %v1063 = vadd.f32 %v1039, %v1055
  %1067 = vrot.lane.b32.xlu0 %v1061, 108
  %v1068 = vpop.permute.xlu0 %1067
  %1069 = vrot.lane.b32.xlu0 %v1062, 108
  %v1070 = vpop.permute.xlu0 %1069
  %1071 = vrot.lane.b32.xlu0 %v1063, 108
  %v1072 = vpop.permute.xlu0 %1071
  %v1073 = vsel %vm751, %v1068, %v1070
  %v1074 = vsel %vm751, %v1070, %v1072
  %v1078 = vadd.f32 %v1006, %v1073
  %v1079 = vadd.f32 %v1007, %v1074
  %v1080 = vadd.f32 %v1008, %v1072
  %1081 = vset.pattern.permute.xlu0 24
  %1082 = vperm.xlu0 %1081, %v934
  %v1083 = vpop.permute.xlu0 %1082
  %v1085 = vadd.f32 %v1078, %v1083
  %v1086 = vadd.f32 %v1079, %v1083
  %v1087 = vadd.f32 %v1080, %v1083
  %v1088 = vmax.f32 %v1085, 0.0
  %v1089 = vmax.f32 %v1086, 0.0
  %v1090 = vmax.f32 %v1087, 0.0
  %s1091 = scalar_lea.vmem %s1, 26
  %v1092 = vld [vmem:[%s1091] ss:$8 sm:$0x7]
  %v1094 = vlaneseq
  %v1095 = vshrl.u32 %v1094, 7
  %v1096 = vsub.s32 0, %v1095
  %v1097 = vrot.slane %v1092, %v1096
  %v1098 = vlaneseq
  %v1099 = vshrl.u32 %v1098, 7
  %v1100 = vsub.s32 1, %v1099
  %v1101 = vrot.slane %v1092, %v1100
  %v1102 = vlaneseq
  %v1103 = vshrl.u32 %v1102, 7
  %v1104 = vsub.s32 2, %v1103
  %v1105 = vrot.slane %v1092, %v1104
  %v1109 = vmul.f32 %v1088, %v1097
  %v1110 = vmul.f32 %v1089, %v1101
  %v1111 = vmul.f32 %v1090, %v1105
  %1112 = vst [vmem:[#allocation2] sm:$0xff] 0.0
  %1113 = vst [vmem:[#allocation2 + $0x18] sm:$0xff] 0.0
  %v1114 = vlaneseq
  %vm1115 = vcmp.ge.s32.totalorder %v1114, 0
  %vm1116 = vcmp.lt.s32.totalorder %v1114, 256
  %vm1117 = vmand %vm1115, %vm1116
  %s1118 = scalar_lea.vmem [#allocation2], 15
  %1119 = vst.msk [vmem:[%s1118] ss:$8 sm:$0x3] %vm1117, 0.0
  %1120 = vst.msk [vmem:[%s1118] ss:$8 sm:$0x0] %vm1117, 0.0
  %1121 = vst [vmem:[#allocation2 + $0x8] sm:$0x7f] %v1109
  %1122 = vst [vmem:[#allocation2 + $0x10] sm:$0x7f] %v1110
  %vm1123 = vcmask 686080
  %1124 = vst.msk [vmem:[#allocation2 + $0x18] sm:$0x7f] %vm1123, %v1111
  %v1125 = vld [vmem:[#allocation2] sm:$0xff]
  %v1126 = vld [vmem:[#allocation2 + $0x8] sm:$0xff]
  %v1127 = vld [vmem:[#allocation2 + $0x10] sm:$0xff]
  %v1128 = vld [vmem:[#allocation2 + $0x18] sm:$0xff]
  %1133 = vrot.lane.b32.xlu0 %v1125, 41
  %v1134 = vpop.permute.xlu0 %1133
  %1135 = vrot.lane.b32.xlu0 %v1126, 41
  %v1136 = vpop.permute.xlu0 %1135
  %1137 = vrot.lane.b32.xlu0 %v1127, 41
  %v1138 = vpop.permute.xlu0 %1137
  %1139 = vrot.lane.b32.xlu0 %v1128, 41
  %v1140 = vpop.permute.xlu0 %1139
  %vm1141 = vcmask 334848
  %v1142 = vsel %vm1141, %v1134, %v1136
  %v1143 = vsel %vm1141, %v1136, %v1138
  %v1144 = vsel %vm1141, %v1138, %v1140
  %1148 = vst [vmem:[#allocation3] sm:$0xff] %v1142
  %1149 = vst [vmem:[#allocation3 + $0x8] sm:$0xff] %v1143
  %1150 = vst.msk [vmem:[#allocation3 + $0x10] sm:$0xff] %vm896, %v1144
  %v1151 = vld [vmem:[#allocation2] sm:$0xff]
  %v1152 = vld [vmem:[#allocation2 + $0x8] sm:$0xff]
  %v1153 = vld [vmem:[#allocation2 + $0x10] sm:$0xff]
  %v1154 = vld [vmem:[#allocation2 + $0x18] sm:$0xff]
  %1159 = vrot.lane.b32.xlu0 %v1151, 40
  %v1160 = vpop.permute.xlu0 %1159
  %1161 = vrot.lane.b32.xlu0 %v1152, 40
  %v1162 = vpop.permute.xlu0 %1161
  %1163 = vrot.lane.b32.xlu0 %v1153, 40
  %v1164 = vpop.permute.xlu0 %1163
  %1165 = vrot.lane.b32.xlu0 %v1154, 40
  %v1166 = vpop.permute.xlu0 %1165
  %vm1167 = vcmask 326656
  %v1168 = vsel %vm1167, %v1160, %v1162
  %v1169 = vsel %vm1167, %v1162, %v1164
  %v1170 = vsel %vm1167, %v1164, %v1166
  %1174 = vst [vmem:[#allocation3 + $0x18] sm:$0xff] %v1168
  %1175 = vst [vmem:[#allocation3 + $0x20] sm:$0xff] %v1169
  %1176 = vst.msk [vmem:[#allocation3 + $0x28] sm:$0xff] %vm896, %v1170
  %v1177 = vld [vmem:[#allocation2] sm:$0xff]
  %v1178 = vld [vmem:[#allocation2 + $0x8] sm:$0xff]
  %v1179 = vld [vmem:[#allocation2 + $0x10] sm:$0xff]
  %v1180 = vld [vmem:[#allocation2 + $0x18] sm:$0xff]
  %1185 = vrot.lane.b32.xlu0 %v1177, 39
  %v1186 = vpop.permute.xlu0 %1185
  %1187 = vrot.lane.b32.xlu0 %v1178, 39
  %v1188 = vpop.permute.xlu0 %1187
  %1189 = vrot.lane.b32.xlu0 %v1179, 39
  %v1190 = vpop.permute.xlu0 %1189
  %1191 = vrot.lane.b32.xlu0 %v1180, 39
  %v1192 = vpop.permute.xlu0 %1191
  %vm1193 = vcmask 318464
  %v1194 = vsel %vm1193, %v1186, %v1188
  %v1195 = vsel %vm1193, %v1188, %v1190
  %v1196 = vsel %vm1193, %v1190, %v1192
  %1200 = vst [vmem:[#allocation3 + $0x30] sm:$0xff] %v1194
  %1201 = vst [vmem:[#allocation3 + $0x38] sm:$0xff] %v1195
  %1202 = vst.msk [vmem:[#allocation3 + $0x40] sm:$0xff] %vm896, %v1196
  %v1203 = vld [vmem:[#allocation2] sm:$0xff]
  %v1204 = vld [vmem:[#allocation2 + $0x8] sm:$0xff]
  %v1205 = vld [vmem:[#allocation2 + $0x10] sm:$0xff]
  %v1206 = vld [vmem:[#allocation2 + $0x18] sm:$0xff]
  %1211 = vrot.lane.b32.xlu0 %v1203, 21
  %v1212 = vpop.permute.xlu0 %1211
  %1213 = vrot.lane.b32.xlu0 %v1204, 21
  %v1214 = vpop.permute.xlu0 %1213
  %1215 = vrot.lane.b32.xlu0 %v1205, 21
  %v1216 = vpop.permute.xlu0 %1215
  %1217 = vrot.lane.b32.xlu0 %v1206, 21
  %v1218 = vpop.permute.xlu0 %1217
  %vm1219 = vcmask 171008
  %v1220 = vsel %vm1219, %v1212, %v1214
  %v1221 = vsel %vm1219, %v1214, %v1216
  %v1222 = vsel %vm1219, %v1216, %v1218
  %1226 = vst [vmem:[#allocation3 + $0x48] sm:$0xff] %v1220
  %1227 = vst [vmem:[#allocation3 + $0x50] sm:$0xff] %v1221
  %1228 = vst.msk [vmem:[#allocation3 + $0x58] sm:$0xff] %vm896, %v1222
  %v1229 = vld [vmem:[#allocation2] sm:$0xff]
  %v1230 = vld [vmem:[#allocation2 + $0x8] sm:$0xff]
  %v1231 = vld [vmem:[#allocation2 + $0x10] sm:$0xff]
  %v1232 = vld [vmem:[#allocation2 + $0x18] sm:$0xff]
  %1237 = vrot.lane.b32.xlu0 %v1229, 20
  %v1238 = vpop.permute.xlu0 %1237
  %1239 = vrot.lane.b32.xlu0 %v1230, 20
  %v1240 = vpop.permute.xlu0 %1239
  %1241 = vrot.lane.b32.xlu0 %v1231, 20
  %v1242 = vpop.permute.xlu0 %1241
  %1243 = vrot.lane.b32.xlu0 %v1232, 20
  %v1244 = vpop.permute.xlu0 %1243
  %vm1245 = vcmask 162816
  %v1246 = vsel %vm1245, %v1238, %v1240
  %v1247 = vsel %vm1245, %v1240, %v1242
  %v1248 = vsel %vm1245, %v1242, %v1244
  %1252 = vst [vmem:[#allocation3 + $0x60] sm:$0xff] %v1246
  %1253 = vst [vmem:[#allocation3 + $0x68] sm:$0xff] %v1247
  %1254 = vst.msk [vmem:[#allocation3 + $0x70] sm:$0xff] %vm896, %v1248
  %v1255 = vld [vmem:[#allocation2] sm:$0xff]
  %v1256 = vld [vmem:[#allocation2 + $0x8] sm:$0xff]
  %v1257 = vld [vmem:[#allocation2 + $0x10] sm:$0xff]
  %v1258 = vld [vmem:[#allocation2 + $0x18] sm:$0xff]
  %1263 = vrot.lane.b32.xlu0 %v1255, 19
  %v1264 = vpop.permute.xlu0 %1263
  %1265 = vrot.lane.b32.xlu0 %v1256, 19
  %v1266 = vpop.permute.xlu0 %1265
  %1267 = vrot.lane.b32.xlu0 %v1257, 19
  %v1268 = vpop.permute.xlu0 %1267
  %1269 = vrot.lane.b32.xlu0 %v1258, 19
  %v1270 = vpop.permute.xlu0 %1269
  %vm1271 = vcmask 154624
  %v1272 = vsel %vm1271, %v1264, %v1266
  %v1273 = vsel %vm1271, %v1266, %v1268
  %v1274 = vsel %vm1271, %v1268, %v1270
  %1278 = vst [vmem:[#allocation3 + $0x78] sm:$0xff] %v1272
  %1279 = vst [vmem:[#allocation3 + $0x80] sm:$0xff] %v1273
  %1280 = vst.msk [vmem:[#allocation3 + $0x88] sm:$0xff] %vm896, %v1274
  %v1281 = vld [vmem:[#allocation2] sm:$0xff]
  %v1282 = vld [vmem:[#allocation2 + $0x8] sm:$0xff]
  %v1283 = vld [vmem:[#allocation2 + $0x10] sm:$0xff]
  %v1284 = vld [vmem:[#allocation2 + $0x18] sm:$0xff]
  %1289 = vrot.lane.b32.xlu0 %v1281, 1
  %v1290 = vpop.permute.xlu0 %1289
  %1291 = vrot.lane.b32.xlu0 %v1282, 1
  %v1292 = vpop.permute.xlu0 %1291
  %1293 = vrot.lane.b32.xlu0 %v1283, 1
  %v1294 = vpop.permute.xlu0 %1293
  %1295 = vrot.lane.b32.xlu0 %v1284, 1
  %v1296 = vpop.permute.xlu0 %1295
  %vm1297 = vcmask 7168
  %v1298 = vsel %vm1297, %v1290, %v1292
  %v1299 = vsel %vm1297, %v1292, %v1294
  %v1300 = vsel %vm1297, %v1294, %v1296
  %1304 = vst [vmem:[#allocation3 + $0x90] sm:$0xff] %v1298
  %1305 = vst [vmem:[#allocation3 + $0x98] sm:$0xff] %v1299
  %1306 = vst.msk [vmem:[#allocation3 + $0xa0] sm:$0xff] %vm896, %v1300
  %v1307 = vld [vmem:[#allocation2 + $0x8] sm:$0xff]
  %v1308 = vld [vmem:[#allocation2 + $0x10] sm:$0xff]
  %v1309 = vld [vmem:[#allocation2 + $0x18] sm:$0xff]
  %1310 = vst [vmem:[#allocation3 + $0xa8] sm:$0xff] %v1307
  %1311 = vst [vmem:[#allocation3 + $0xb0] sm:$0xff] %v1308
  %1312 = vst.msk [vmem:[#allocation3 + $0xb8] sm:$0xff] %vm896, %v1309
  %v1313 = vld [vmem:[#allocation2 + $0x8] sm:$0xff]
  %v1314 = vld [vmem:[#allocation2 + $0x10] sm:$0xff]
  %v1315 = vld [vmem:[#allocation2 + $0x18] sm:$0xff]
  %1319 = vrot.lane.b32.xlu0 %v1313, 127
  %v1320 = vpop.permute.xlu0 %1319
  %1321 = vrot.lane.b32.xlu0 %v1314, 127
  %v1322 = vpop.permute.xlu0 %1321
  %1323 = vrot.lane.b32.xlu0 %v1315, 127
  %v1324 = vpop.permute.xlu0 %1323
  %v1325 = vsel %vm78, %v1320, %v1322
  %v1326 = vsel %vm78, %v1322, %v1324
  %1330 = vst [vmem:[#allocation3 + $0xc0] sm:$0xff] %v1325
  %1331 = vst [vmem:[#allocation3 + $0xc8] sm:$0xff] %v1326
  %1332 = vst.msk [vmem:[#allocation3 + $0xd0] sm:$0xff] %vm896, %v1324
  %v1333 = vld [vmem:[#allocation2 + $0x8] sm:$0xff]
  %v1334 = vld [vmem:[#allocation2 + $0x10] sm:$0xff]
  %v1335 = vld [vmem:[#allocation2 + $0x18] sm:$0xff]
  %1339 = vrot.lane.b32.xlu0 %v1333, 109
  %v1340 = vpop.permute.xlu0 %1339
  %1341 = vrot.lane.b32.xlu0 %v1334, 109
  %v1342 = vpop.permute.xlu0 %1341
  %1343 = vrot.lane.b32.xlu0 %v1335, 109
  %v1344 = vpop.permute.xlu0 %1343
  %vm1345 = vcmask 891904
  %v1346 = vsel %vm1345, %v1340, %v1342
  %v1347 = vsel %vm1345, %v1342, %v1344
  %1351 = vst [vmem:[#allocation3 + $0xd8] sm:$0xff] %v1346
  %1352 = vst [vmem:[#allocation3 + $0xe0] sm:$0xff] %v1347
  %1353 = vst.msk [vmem:[#allocation3 + $0xe8] sm:$0xff] %vm896, %v1344
  %v1354 = vld [vmem:[#allocation2 + $0x8] sm:$0xff]
  %v1355 = vld [vmem:[#allocation2 + $0x10] sm:$0xff]
  %v1356 = vld [vmem:[#allocation2 + $0x18] sm:$0xff]
  %1360 = vrot.lane.b32.xlu0 %v1354, 108
  %v1361 = vpop.permute.xlu0 %1360
  %1362 = vrot.lane.b32.xlu0 %v1355, 108
  %v1363 = vpop.permute.xlu0 %1362
  %1364 = vrot.lane.b32.xlu0 %v1356, 108
  %v1365 = vpop.permute.xlu0 %1364
  %v1366 = vsel %vm751, %v1361, %v1363
  %v1367 = vsel %vm751, %v1363, %v1365
  %1371 = vst [vmem:[#allocation3 + $0xf0] sm:$0xff] %v1366
  %1372 = vst [vmem:[#allocation3 + $0xf8] sm:$0xff] %v1367
  %1373 = vst.msk [vmem:[#allocation3 + $0x100] sm:$0xff] %vm896, %v1365
  %v1374 = vld [vmem:[#allocation2 + $0x8] sm:$0xff]
  %v1375 = vld [vmem:[#allocation2 + $0x10] sm:$0xff]
  %v1376 = vld [vmem:[#allocation2 + $0x18] sm:$0xff]
  %1380 = vrot.lane.b32.xlu0 %v1374, 107
  %v1381 = vpop.permute.xlu0 %1380
  %1382 = vrot.lane.b32.xlu0 %v1375, 107
  %v1383 = vpop.permute.xlu0 %1382
  %1384 = vrot.lane.b32.xlu0 %v1376, 107
  %v1385 = vpop.permute.xlu0 %1384
  %vm1386 = vcmask 875520
  %v1387 = vsel %vm1386, %v1381, %v1383
  %v1388 = vsel %vm1386, %v1383, %v1385
  %1392 = vst [vmem:[#allocation3 + $0x108] sm:$0xff] %v1387
  %1393 = vst [vmem:[#allocation3 + $0x110] sm:$0xff] %v1388
  %1394 = vst.msk [vmem:[#allocation3 + $0x118] sm:$0xff] %vm896, %v1385
  %v1395 = vld [vmem:[%s1] sm:$0xff]
  %v1396 = vld [vmem:[#allocation3] sm:$0xff]
  %v1397 = vld [vmem:[#allocation3 + $0x8] sm:$0xff]
  %v1398 = vld [vmem:[#allocation3 + $0x10] sm:$0xff]
  %v1399 = vld [vmem:[#allocation3 + $0x18] sm:$0xff]
  %v1400 = vld [vmem:[#allocation3 + $0x20] sm:$0xff]
  %v1401 = vld [vmem:[#allocation3 + $0x28] sm:$0xff]
  %v1402 = vld [vmem:[#allocation3 + $0x30] sm:$0xff]
  %v1403 = vld [vmem:[#allocation3 + $0x38] sm:$0xff]
  %v1404 = vld [vmem:[#allocation3 + $0x40] sm:$0xff]
  %v1405 = vld [vmem:[#allocation3 + $0x48] sm:$0xff]
  %v1406 = vld [vmem:[#allocation3 + $0x50] sm:$0xff]
  %v1407 = vld [vmem:[#allocation3 + $0x58] sm:$0xff]
  %v1408 = vld [vmem:[#allocation3 + $0x60] sm:$0xff]
  %v1409 = vld [vmem:[#allocation3 + $0x68] sm:$0xff]
  %v1410 = vld [vmem:[#allocation3 + $0x70] sm:$0xff]
  %v1411 = vld [vmem:[#allocation3 + $0x78] sm:$0xff]
  %v1412 = vld [vmem:[#allocation3 + $0x80] sm:$0xff]
  %v1413 = vld [vmem:[#allocation3 + $0x88] sm:$0xff]
  %v1414 = vld [vmem:[#allocation3 + $0x90] sm:$0xff]
  %v1415 = vld [vmem:[#allocation3 + $0x98] sm:$0xff]
  %v1416 = vld [vmem:[#allocation3 + $0xa0] sm:$0xff]
  %v1417 = vld [vmem:[#allocation3 + $0xa8] sm:$0xff]
  %v1418 = vld [vmem:[#allocation3 + $0xb0] sm:$0xff]
  %v1419 = vld [vmem:[#allocation3 + $0xb8] sm:$0xff]
  %v1420 = vld [vmem:[#allocation3 + $0xc0] sm:$0xff]
  %v1421 = vld [vmem:[#allocation3 + $0xc8] sm:$0xff]
  %v1422 = vld [vmem:[#allocation3 + $0xd0] sm:$0xff]
  %v1423 = vld [vmem:[#allocation3 + $0xd8] sm:$0xff]
  %v1424 = vld [vmem:[#allocation3 + $0xe0] sm:$0xff]
  %v1425 = vld [vmem:[#allocation3 + $0xe8] sm:$0xff]
  %v1426 = vld [vmem:[#allocation3 + $0xf0] sm:$0xff]
  %v1427 = vld [vmem:[#allocation3 + $0xf8] sm:$0xff]
  %v1428 = vld [vmem:[#allocation3 + $0x100] sm:$0xff]
  %v1429 = vld [vmem:[#allocation3 + $0x108] sm:$0xff]
  %v1430 = vld [vmem:[#allocation3 + $0x110] sm:$0xff]
  %v1431 = vld [vmem:[#allocation3 + $0x118] sm:$0xff]
  %1433 = vset.pattern.permute.xlu0 25
  %1434 = vperm.xlu0 %1433, %v1395
  %v1435 = vpop.permute.xlu0 %1434
  %1437 = vrot.lane.b32.xlu0 %v1395, 96
  %v1438 = vpop.permute.xlu0 %1437
  %vm1439 = vcmask 785408
  %v1440 = vsel %vm1439, %v1438, 0
  %1442 = vmatprep.subr.mxu0 %v1397
  %1443 = vmatpush1.msra.mxu0 %v1396
  %1444 = vmatprep.subr.mxu0 %v1400
  %1445 = vmatpush1.msra.mxu0 %v1399
  %1446 = vmatprep.subr.mxu0 %v1403
  %1447 = vmatpush1.msra.mxu0 %v1402
  %1448 = vmatprep.subr.mxu0 %v1406
  %1449 = vmatpush1.msra.mxu0 %v1405
  %1450 = vmatprep.subr.mxu0 %v1409
  %1451 = vmatpush1.msra.mxu0 %v1408
  %1452 = vmatprep.subr.mxu0 %v1412
  %1453 = vmatpush1.msra.mxu0 %v1411
  %1454 = vmatprep.subr.mxu0 %v1415
  %1455 = vmatpush1.msra.mxu0 %v1414
  %1456 = vmatprep.subr.mxu0 %v1418
  %1457 = vmatpush1.msra.mxu0 %v1417
  %1458 = vmatprep.subr.mxu0 %v1421
  %1459 = vmatpush1.msra.mxu0 %v1420
  %1460 = vmatprep.subr.mxu0 %v1424
  %1461 = vmatpush1.msra.mxu0 %v1423
  %1462 = vmatprep.subr.mxu0 %v1427
  %1463 = vmatpush1.msra.mxu0 %v1426
  %1464 = vmatprep.subr.mxu0 %v1430
  %1465 = vmatpush1.msra.mxu0 %v1429
  %1466 = vmatprep.subr.mxu0 0.0
  %1467 = vmatpush1.msra.mxu0 0.0
  %1468 = vmatprep.subr.mxu0 0.0
  %1469 = vmatpush1.msra.mxu0 0.0
  %1470 = vmatprep.subr.mxu0 0.0
  %1471 = vmatpush1.msra.mxu0 0.0
  %1472 = vmatprep.subr.mxu0 0.0
  %1473 = vmatpush1.msra.mxu0 0.0
  %1474 = vmatprep.subr.mxu0 0.0
  %1475 = vmatpush1.msra.mxu0 0.0
  %1476 = vmatprep.subr.mxu0 0.0
  %1477 = vmatpush1.msra.mxu0 0.0
  %1478 = vmatprep.subr.mxu0 0.0
  %1479 = vmatpush1.msra.mxu0 0.0
  %1480 = vmatprep.subr.mxu0 0.0
  %1481 = vmatpush1.msra.mxu0 0.0
  %1482 = vmatprep.subr.mxu0 0.0
  %1483 = vmatpush1.msra.mxu0 0.0
  %1484 = vmatprep.subr.mxu0 0.0
  %1485 = vmatpush1.msra.mxu0 0.0
  %1486 = vmatprep.subr.mxu0 0.0
  %1487 = vmatpush1.msra.mxu0 0.0
  %1488 = vmatprep.subr.mxu0 0.0
  %1489 = vmatpush1.msra.mxu0 0.0
  %1490 = vmatprep.subr.mxu0 0.0
  %1491 = vmatpush1.msra.mxu0 0.0
  %1492 = vmatprep.subr.mxu0 0.0
  %1493 = vmatpush1.msra.mxu0 0.0
  %1494 = vmatprep.subr.mxu0 0.0
  %1495 = vmatpush1.msra.mxu0 0.0
  %1496 = vmatprep.subr.mxu0 0.0
  %1497 = vmatpush1.msra.mxu0 0.0
  %1498 = vmatprep.subr.mxu0 0.0
  %1499 = vmatpush1.msra.mxu0 0.0
  %1500 = vmatprep.subr.mxu0 0.0
  %1501 = vmatpush1.msra.mxu0 0.0
  %1502 = vmatprep.subr.mxu0 0.0
  %1503 = vmatpush1.msra.mxu0 0.0
  %1504 = vmatprep.subr.mxu0 0.0
  %1505 = vmatpush1.msra.mxu0 0.0
  %1506 = vmatprep.mubr.f32.mxu0 0.0
  %1507 = vmatmul.mubr.f32.gmra.mrb[0].mxu0 %v1440
  %v1508 = vpop.f32.mrb[0].mxu0
  %v1509 = vadd.f32 %v1435, %v1508
  %v1510 = vpop.f32.mrb[0].mxu0
  %v1511 = vadd.f32 %v1435, %v1510
  %1512 = vdwg.mxu0
  %1513 = vmatprep.subr.mxu0 0.0
  %1514 = vmatpush1.msra.mxu0 %v1398
  %1515 = vmatprep.subr.mxu0 0.0
  %1516 = vmatpush1.msra.mxu0 %v1401
  %1517 = vmatprep.subr.mxu0 0.0
  %1518 = vmatpush1.msra.mxu0 %v1404
  %1519 = vmatprep.subr.mxu0 0.0
  %1520 = vmatpush1.msra.mxu0 %v1407
  %1521 = vmatprep.subr.mxu0 0.0
  %1522 = vmatpush1.msra.mxu0 %v1410
  %1523 = vmatprep.subr.mxu0 0.0
  %1524 = vmatpush1.msra.mxu0 %v1413
  %1525 = vmatprep.subr.mxu0 0.0
  %1526 = vmatpush1.msra.mxu0 %v1416
  %1527 = vmatprep.subr.mxu0 0.0
  %1528 = vmatpush1.msra.mxu0 %v1419
  %1529 = vmatprep.subr.mxu0 0.0
  %1530 = vmatpush1.msra.mxu0 %v1422
  %1531 = vmatprep.subr.mxu0 0.0
  %1532 = vmatpush1.msra.mxu0 %v1425
  %1533 = vmatprep.subr.mxu0 0.0
  %1534 = vmatpush1.msra.mxu0 %v1428
  %1535 = vmatprep.subr.mxu0 0.0
  %1536 = vmatpush1.msra.mxu0 %v1431
  %1537 = vmatprep.subr.mxu0 0.0
  %1538 = vmatpush1.msra.mxu0 0.0
  %1539 = vmatprep.subr.mxu0 0.0
  %1540 = vmatpush1.msra.mxu0 0.0
  %1541 = vmatprep.subr.mxu0 0.0
  %1542 = vmatpush1.msra.mxu0 0.0
  %1543 = vmatprep.subr.mxu0 0.0
  %1544 = vmatpush1.msra.mxu0 0.0
  %1545 = vmatprep.subr.mxu0 0.0
  %1546 = vmatpush1.msra.mxu0 0.0
  %1547 = vmatprep.subr.mxu0 0.0
  %1548 = vmatpush1.msra.mxu0 0.0
  %1549 = vmatprep.subr.mxu0 0.0
  %1550 = vmatpush1.msra.mxu0 0.0
  %1551 = vmatprep.subr.mxu0 0.0
  %1552 = vmatpush1.msra.mxu0 0.0
  %1553 = vmatprep.subr.mxu0 0.0
  %1554 = vmatpush1.msra.mxu0 0.0
  %1555 = vmatprep.subr.mxu0 0.0
  %1556 = vmatpush1.msra.mxu0 0.0
  %1557 = vmatprep.subr.mxu0 0.0
  %1558 = vmatpush1.msra.mxu0 0.0
  %1559 = vmatprep.subr.mxu0 0.0
  %1560 = vmatpush1.msra.mxu0 0.0
  %1561 = vmatprep.subr.mxu0 0.0
  %1562 = vmatpush1.msra.mxu0 0.0
  %1563 = vmatprep.subr.mxu0 0.0
  %1564 = vmatpush1.msra.mxu0 0.0
  %1565 = vmatprep.subr.mxu0 0.0
  %1566 = vmatpush1.msra.mxu0 0.0
  %1567 = vmatprep.subr.mxu0 0.0
  %1568 = vmatpush1.msra.mxu0 0.0
  %1569 = vmatprep.subr.mxu0 0.0
  %1570 = vmatpush1.msra.mxu0 0.0
  %1571 = vmatprep.subr.mxu0 0.0
  %1572 = vmatpush1.msra.mxu0 0.0
  %1573 = vmatprep.subr.mxu0 0.0
  %1574 = vmatpush1.msra.mxu0 0.0
  %1575 = vmatprep.subr.mxu0 0.0
  %1576 = vmatpush1.msra.mxu0 0.0
  %1577 = vmatprep.mubr.f32.mxu0 0.0
  %1578 = vmatmul.mubr.f32.gmra.mrb[0].mxu0 %v1440
  %v1579 = vpop.f32.mrb[0].mxu0
  %v1580 = vadd.f32 %v1435, %v1579
  %v1581 = vpop.f32.mrb[0].mxu0
  %1582 = vdwg.mxu0
  %v1583 = vxor.u32 %v1509, 2147483648
  %v1584 = vxor.u32 %v1511, 2147483648
  %v1585 = vxor.u32 %v1580, 2147483648
  %v1586 = vmul.f32 %v1583, 1.442695
  %v1587 = vpow.pop %v1586
  %v1588 = vmul.f32 %v1584, 1.442695
  %v1589 = vpow.pop %v1588
  %v1590 = vmul.f32 %v1585, 1.442695
  %v1591 = vpow.pop %v1590
  %v1592 = vadd.f32 %v1587, 1.0
  %v1593 = vadd.f32 %v1589, 1.0
  %v1594 = vadd.f32 %v1591, 1.0
  %v1595 = vrcp.pop %v1592
  %v1596 = vmul.f32 1.0, %v1595
  %v1597 = vrcp.pop %v1593
  %v1598 = vmul.f32 1.0, %v1597
  %v1599 = vrcp.pop %v1594
  %v1600 = vmul.f32 1.0, %v1599
  %v1601 = vmul.f32 %v1596, %v929
  %v1602 = vmul.f32 %v1598, %v931
  %v1603 = vmul.f32 %v1600, %v933
  %1604 = vst [vmem:[%s2] sm:$0xff] %v1601
  %1605 = vst [vmem:[%s2 + $0x8] sm:$0xff] %v1602
  %1606 = vst.msk [vmem:[%s2 + $0x10] sm:$0xff] %vm896, %v1603
  // Predicated region
  $region10: #{forward.1} parent=0 // pred_check
    _
  $region11: #{forward.1} parent=0 // pred_check_branch
    %1608 = sbr.rel (0) target = $region13
  $region12: #{forward.1} parent=0 // pred_region
    _
  $region13: #{forward.1} parent=0 // pred_fallthru
    _
  // Predicated region
  $region14: #{forward.1} parent=0 // pred_check
    _
  $region15: #{forward.1} parent=0 // pred_check_branch
    %1610 = sbr.rel (0) target = $region17
  $region16: #{forward.1} parent=0 // pred_region
    _
  $region17: #{forward.1} parent=0 // pred_fallthru
    _

</llo_original>
